<compile_context>
chip_gen: v7x
topology: tpu7x:2x2x1
jax: 0.10.0
libtpu: 0.0.40
codegen_flags: <defaults>
</compile_context>

<pallas_src>
import functools
import math

import jax
import jax.numpy as jnp
from jax import lax
from jax.experimental import pallas as pl
from jax.experimental.pallas import tpu as pltpu

TEMPERATURE = 0.07
BASE_TEMPERATURE = 0.07


def _round_up(x, m):
    return (x + m - 1) // m * m


def _lcm(a, b):
    return a * b // math.gcd(a, b)


def _supcon_kernel(fr_ref, fc_ref, lr_ref, lc_ref, out_ref,
                   xr_sc, m_sc, l_sc, a_sc, n_sc,
                   *, batch, block_m, block_n, temperature, base_temperature):
    i = pl.program_id(0)          # row tile (parallel / megacore)
    j = pl.program_id(1)          # col tile (arbitrary / reduction, innermost)
    nj = pl.num_programs(1)

    inv_sqrt_t = 1.0 / (temperature ** 0.5)

    @pl.when(j == 0)
    def _init():
        # Normalize the row tile once per row tile (reused across all column
        # tiles); fold 1/sqrt(T) into the operand so the matmul directly yields
        # s_ij = <xn_i, xn_j> / T.  rsqrt matches F.normalize's max(||x||, 1e-12).
        xr = fr_ref[...].astype(jnp.float32)
        inv = lax.rsqrt(jnp.maximum(jnp.sum(xr * xr, axis=1, keepdims=True),
                                    1e-24)) * inv_sqrt_t
        xr_sc[...] = (xr * inv).astype(xr_sc.dtype)
        m_sc[...] = jnp.full_like(m_sc, -jnp.inf)
        l_sc[...] = jnp.zeros_like(l_sc)
        a_sc[...] = jnp.zeros_like(a_sc)
        n_sc[...] = jnp.zeros_like(n_sc)

    # Normalize the column tile (O(Tn*D), negligible vs. the O(Tm*Tn*D) matmul).
    xc = fc_ref[...].astype(jnp.float32)
    inv_c = lax.rsqrt(jnp.maximum(jnp.sum(xc * xc, axis=1, keepdims=True),
                                  1e-24)) * inv_sqrt_t
    xcn = (xc * inv_c).astype(xr_sc.dtype)

    # s[r, c] = <f_r, f_c> / (||f_r|| ||f_c|| T) -- contract D of both operands
    # (no explicit transpose); low-precision operands, f32 accumulation on MXU.
    s = lax.dot_general(xr_sc[...], xcn, (((1,), (1,)), ((), ())),
                        preferred_element_type=jnp.float32)     # [Tm, Tn] f32

    # Boolean masks: padded columns excluded, self-contrast excluded, positives
    # are same-label off-diagonal pairs.
    gr = i * block_m + lax.broadcasted_iota(jnp.int32, (block_m, block_n), 0)
    gc = j * block_n + lax.broadcasted_iota(jnp.int32, (block_m, block_n), 1)
    col_valid = gc < batch
    contrast = col_valid & (gr != gc)                      # torch "logits_mask"
    positive = contrast & (lr_ref[...] == lc_ref[...])     # torch "mask"

    # Online (flash-style) softmax statistics.  The running max matches torch:
    # taken over all real columns, including the diagonal.
    s_max = jnp.max(jnp.where(col_valid, s, jnp.float32(-1e30)),
                    axis=1, keepdims=True)
    m_new = jnp.maximum(m_sc[...], s_max)
    alpha = jnp.exp(m_sc[...] - m_new)                     # 0 on the first tile
    e = jnp.where(contrast, jnp.exp(s - m_new), 0.0)
    l_sc[...] = alpha * l_sc[...] + jnp.sum(e, axis=1, keepdims=True)
    a_sc[...] = a_sc[...] + jnp.sum(jnp.where(positive, s, 0.0),
                                    axis=1, keepdims=True)
    n_sc[...] = n_sc[...] + jnp.sum(positive.astype(jnp.float32),
                                    axis=1, keepdims=True)
    m_sc[...] = m_new

    @pl.when(j == nj - 1)
    def _finalize():
        n_pos = n_sc[...]
        n_safe = jnp.where(n_pos < 1e-6, 1.0, n_pos)       # torch.where clamp
        lse = m_sc[...] + jnp.log(l_sc[...])               # log sum_{c!=r} exp(s_rc)
        # sum_c mask*log_prob = sum_c mask*s - (sum_c mask) * lse
        mean_log_prob_pos = (a_sc[...] - n_pos * lse) / n_safe
        loss_rows = -(temperature / base_temperature) * mean_log_prob_pos
        out_ref[...] = loss_rows.astype(out_ref.dtype)     # padded rows write 0


def supcon_loss(features, labels=None, *, temperature=TEMPERATURE,
                base_temperature=BASE_TEMPERATURE, block_m=None, block_n=None,
                use_bf16_matmul=True, vmem_limit_bytes=64 * 1024 * 1024):
    """features: [bsz, feat_dim] (any float dtype), labels: [bsz] ints or None.

    labels=None reproduces the SimCLR / eye-mask degenerate case of the module.
    """
    # TODO(synk): explicit user-provided `mask` argument and the n_views>1 /
    # contrast_mode='one' paths are not wired up (2-D input => n_views == 1, so
    # anchor == contrast and the labels path covers the module's forward).
    features = jnp.asarray(features)
    B, D = features.shape
    if labels is None:
        labels = jnp.arange(B, dtype=jnp.int32)            # mask = eye(B)
    labels = jnp.asarray(labels).reshape(B).astype(jnp.int32)

    # Generation-aware default tiles (v5e: 16 MiB scoped VMEM, 128-wide MXU).
    if block_m is None or block_n is None:
        kind = jax.devices()[0].device_kind.lower()
        dbm, dbn = (128, 256) if "v5" in kind else (256, 512)
        block_m = dbm if block_m is None else block_m
        block_n = dbn if block_n is None else block_n

    # TPU tiling constraints: sublane-dim blocks multiple of 8, lane-dim
    # (column-label) blocks multiple of 128; clamp to the (padded) batch.
    block_m = _round_up(max(8, min(block_m, _round_up(B, 8))), 8)
    block_n = _round_up(max(128, min(block_n, _round_up(B, 128))), 128)
    bp = _round_up(B, _lcm(block_m, block_n))

    pad = bp - B
    f_p = jnp.pad(features, ((0, pad), (0, 0))) if pad else features
    lab_p = jnp.pad(labels, (0, pad), constant_values=-1) if pad else labels
    lab_col = lab_p.reshape(bp, 1)
    lab_row = lab_p.reshape(1, bp)

    mm_dtype = jnp.bfloat16 if use_bf16_matmul else jnp.float32
    grid = (bp // block_m, bp // block_n)

    kernel = functools.partial(
        _supcon_kernel, batch=B, block_m=block_m, block_n=block_n,
        temperature=float(temperature), base_temperature=float(base_temperature))

    per_row = pl.pallas_call(
        kernel,
        out_shape=jax.ShapeDtypeStruct((bp, 1), jnp.float32),
        grid_spec=pltpu.PrefetchScalarGridSpec(
            num_scalar_prefetch=0,
            grid=grid,
            in_specs=[
                pl.BlockSpec((block_m, D), lambda i, j: (i, 0)),   # row features
                pl.BlockSpec((block_n, D), lambda i, j: (j, 0)),   # col features
                pl.BlockSpec((block_m, 1), lambda i, j: (i, 0)),   # row labels
                pl.BlockSpec((1, block_n), lambda i, j: (0, j)),   # col labels
            ],
            out_specs=pl.BlockSpec((block_m, 1), lambda i, j: (i, 0)),
            scratch_shapes=[
                pltpu.VMEM((block_m, D), mm_dtype),                # normalized row tile
                pltpu.VMEM((block_m, 1), jnp.float32),             # running max
                pltpu.VMEM((block_m, 1), jnp.float32),             # running sum-exp
                pltpu.VMEM((block_m, 1), jnp.float32),             # sum(mask * logits)
                pltpu.VMEM((block_m, 1), jnp.float32),             # sum(mask)
            ]),
        compiler_params=pltpu.CompilerParams(
            dimension_semantics=("parallel", "arbitrary"),
            vmem_limit_bytes=vmem_limit_bytes),
    )(f_p, f_p, lab_col, lab_row)

    # Padded rows contribute exactly 0; mean over the B real anchors.
    return jnp.sum(per_row) / jnp.float32(B)


def _supcon_loss_ref(features, labels, temperature=TEMPERATURE,
                     base_temperature=BASE_TEMPERATURE):
    """Pure-JAX f32 reference mirroring the PyTorch forward (n_views=1, 'all')."""
    x = jnp.asarray(features, jnp.float32)
    B = x.shape[0]
    xn = x / jnp.maximum(jnp.linalg.norm(x, axis=1, keepdims=True), 1e-12)
    logits = xn @ xn.T / temperature
    logits = logits - jnp.max(logits, axis=1, keepdims=True)
    lab = labels.reshape(-1, 1)
    mask = (lab == lab.T).astype(jnp.float32)
    logits_mask = 1.0 - jnp.eye(B, dtype=jnp.float32)
    mask = mask * logits_mask
    exp_logits = jnp.exp(logits) * logits_mask
    log_prob = logits - jnp.log(jnp.sum(exp_logits, axis=1, keepdims=True))
    mpp = jnp.sum(mask, axis=1)
    mpp = jnp.where(mpp < 1e-6, 1.0, mpp)
    mean_log_prob_pos = jnp.sum(mask * log_prob, axis=1) / mpp
    return jnp.mean(-(temperature / base_temperature) * mean_log_prob_pos)


if __name__ == "__main__":
    key = jax.random.PRNGKey(0)
    kf, kl = jax.random.split(key)
    bsz, feat_dim = 256, 128
    features = jax.random.normal(kf, (bsz, feat_dim), dtype=jnp.float32)
    labels = jax.random.randint(kl, (bsz,), 0, 8, dtype=jnp.int32)

    ref = jax.block_until_ready(_supcon_loss_ref(features, labels))

    # Tiled path (grid 4x2): bf16 MXU operands, f32 accumulation.
    loss_tiled = jax.block_until_ready(
        supcon_loss(features, labels, block_m=64, block_n=128))
    assert jnp.allclose(loss_tiled, ref, atol=3e-2, rtol=1e-2), (loss_tiled, ref)

    # Same tiling, f32 matmul operands: matches the reference tightly.
    loss_f32 = jax.block_until_ready(
        supcon_loss(features, labels, block_m=64, block_n=128,
                    use_bf16_matmul=False))
    assert jnp.allclose(loss_f32, ref, atol=2e-3, rtol=2e-3), (loss_f32, ref)

    # Default, generation-sized tiles.
    loss_default = jax.block_until_ready(supcon_loss(features, labels))
    assert jnp.allclose(loss_default, ref, atol=3e-2, rtol=1e-2), (loss_default, ref)

    # SimCLR degenerate case (labels=None -> eye mask): loss is exactly 0.
    loss_simclr = jax.block_until_ready(supcon_loss(features[:64], None))
    assert jnp.allclose(loss_simclr, 0.0, atol=1e-6), loss_simclr

    print("KERNEL_OK")
</pallas_src>

<mosaic_0001>
module attributes {stable_mosaic.version = 11 : i64} {
  func.func @_supcon_kernel(%arg0: i32, %arg1: i32, %arg2: memref<64x128xf32, #tpu.memory_space<vmem>>, %arg3: memref<128x128xf32, #tpu.memory_space<vmem>>, %arg4: memref<64x1xi32, #tpu.memory_space<vmem>>, %arg5: memref<1x128xi32, #tpu.memory_space<vmem>>, %arg6: memref<64x1xf32, #tpu.memory_space<vmem>>, %arg7: memref<64x128xbf16, #tpu.memory_space<vmem>>, %arg8: memref<64x1xf32, #tpu.memory_space<vmem>>, %arg9: memref<64x1xf32, #tpu.memory_space<vmem>>, %arg10: memref<64x1xf32, #tpu.memory_space<vmem>>, %arg11: memref<64x1xf32, #tpu.memory_space<vmem>>) attributes {dimension_semantics = [#tpu.dimension_semantics<parallel>, #tpu.dimension_semantics<arbitrary>], iteration_bounds = array<i64: 4, 2>, scalar_prefetch = 0 : i64, scratch_operands = 5 : i64, tpu.core_type = #tpu.core_type<tc>, window_params = [{transform_indices = @transform_0, window_bounds = array<i64: 64, 128>}, {transform_indices = @transform_1, window_bounds = array<i64: 128, 128>}, {transform_indices = @transform_2, window_bounds = array<i64: 64, 1>}, {transform_indices = @transform_3, window_bounds = array<i64: 1, 128>}, {transform_indices = @transform_4, window_bounds = array<i64: 64, 1>}]} {
    %c0_i32 = arith.constant 0 : i32
    %0 = arith.cmpi eq, %arg1, %c0_i32 : i32
    %1 = arith.extui %0 : i1 to i32
    %c0_i32_0 = arith.constant 0 : i32
    %2 = arith.cmpi ne, %1, %c0_i32_0 : i32
    scf.if %2 {
      %c0_37 = arith.constant 0 : index
      %c0_38 = arith.constant 0 : index
      %73 = vector.load %arg2[%c0_37, %c0_38] : memref<64x128xf32, #tpu.memory_space<vmem>>, vector<64x128xf32>
      %74 = arith.mulf %73, %73 : vector<64x128xf32>
      %cst_39 = arith.constant dense<0.000000e+00> : vector<64xf32>
      %75 = vector.multi_reduction <add>, %74, %cst_39 [1] : vector<64x128xf32> to vector<64xf32>
      %76 = vector.shape_cast %75 : vector<64xf32> to vector<64x1xf32>
      %cst_40 = arith.constant 1.000000e-24 : f32
      %77 = vector.broadcast %cst_40 : f32 to vector<64x1xf32>
      %78 = arith.maximumf %76, %77 : vector<64x1xf32>
      %79 = math.rsqrt %78 : vector<64x1xf32>
      %cst_41 = arith.constant 3.77964473 : f32
      %80 = vector.broadcast %cst_41 : f32 to vector<64x1xf32>
      %81 = arith.mulf %79, %80 : vector<64x1xf32>
      %82 = vector.broadcast %81 : vector<64x1xf32> to vector<64x128xf32>
      %83 = arith.mulf %73, %82 : vector<64x128xf32>
      %84 = arith.truncf %83 : vector<64x128xf32> to vector<64x128xbf16>
      %c0_42 = arith.constant 0 : index
      %c0_43 = arith.constant 0 : index
      %85 = vector.load %arg7[%c0_42, %c0_43] : memref<64x128xbf16, #tpu.memory_space<vmem>>, vector<64x128xbf16>
      tpu.vector_store %arg7[%c0_42, %c0_43], %84 {strides = array<i32>} : memref<64x128xbf16, #tpu.memory_space<vmem>>, vector<64x128xbf16>,
      %cst_44 = arith.constant 0xFF800000 : f32
      %86 = vector.broadcast %cst_44 : f32 to vector<64x1xf32>
      %c0_45 = arith.constant 0 : index
      %c0_46 = arith.constant 0 : index
      %87 = vector.load %arg8[%c0_45, %c0_46] : memref<64x1xf32, #tpu.memory_space<vmem>>, vector<64x1xf32>
      tpu.vector_store %arg8[%c0_45, %c0_46], %86 {strides = array<i32>} : memref<64x1xf32, #tpu.memory_space<vmem>>, vector<64x1xf32>,
      %cst_47 = arith.constant 0.000000e+00 : f32
      %88 = vector.broadcast %cst_47 : f32 to vector<64x1xf32>
      %c0_48 = arith.constant 0 : index
      %c0_49 = arith.constant 0 : index
      %89 = vector.load %arg9[%c0_48, %c0_49] : memref<64x1xf32, #tpu.memory_space<vmem>>, vector<64x1xf32>
      tpu.vector_store %arg9[%c0_48, %c0_49], %88 {strides = array<i32>} : memref<64x1xf32, #tpu.memory_space<vmem>>, vector<64x1xf32>,
      %cst_50 = arith.constant 0.000000e+00 : f32
      %90 = vector.broadcast %cst_50 : f32 to vector<64x1xf32>
      %c0_51 = arith.constant 0 : index
      %c0_52 = arith.constant 0 : index
      %91 = vector.load %arg10[%c0_51, %c0_52] : memref<64x1xf32, #tpu.memory_space<vmem>>, vector<64x1xf32>
      tpu.vector_store %arg10[%c0_51, %c0_52], %90 {strides = array<i32>} : memref<64x1xf32, #tpu.memory_space<vmem>>, vector<64x1xf32>,
      %cst_53 = arith.constant 0.000000e+00 : f32
      %92 = vector.broadcast %cst_53 : f32 to vector<64x1xf32>
      %c0_54 = arith.constant 0 : index
      %c0_55 = arith.constant 0 : index
      %93 = vector.load %arg11[%c0_54, %c0_55] : memref<64x1xf32, #tpu.memory_space<vmem>>, vector<64x1xf32>
      tpu.vector_store %arg11[%c0_54, %c0_55], %92 {strides = array<i32>} : memref<64x1xf32, #tpu.memory_space<vmem>>, vector<64x1xf32>,
    } else {
    }
    %c0 = arith.constant 0 : index
    %c0_1 = arith.constant 0 : index
    %3 = vector.load %arg3[%c0, %c0_1] : memref<128x128xf32, #tpu.memory_space<vmem>>, vector<128x128xf32>
    %4 = arith.mulf %3, %3 : vector<128x128xf32>
    %cst = arith.constant dense<0.000000e+00> : vector<128xf32>
    %5 = vector.multi_reduction <add>, %4, %cst [1] : vector<128x128xf32> to vector<128xf32>
    %6 = vector.shape_cast %5 : vector<128xf32> to vector<128x1xf32>
    %cst_2 = arith.constant 1.000000e-24 : f32
    %7 = vector.broadcast %cst_2 : f32 to vector<128x1xf32>
    %8 = arith.maximumf %6, %7 : vector<128x1xf32>
    %9 = math.rsqrt %8 : vector<128x1xf32>
    %cst_3 = arith.constant 3.77964473 : f32
    %10 = vector.broadcast %cst_3 : f32 to vector<128x1xf32>
    %11 = arith.mulf %9, %10 : vector<128x1xf32>
    %12 = vector.broadcast %11 : vector<128x1xf32> to vector<128x128xf32>
    %13 = arith.mulf %3, %12 : vector<128x128xf32>
    %14 = arith.truncf %13 : vector<128x128xf32> to vector<128x128xbf16>
    %c0_4 = arith.constant 0 : index
    %c0_5 = arith.constant 0 : index
    %15 = vector.load %arg7[%c0_4, %c0_5] : memref<64x128xbf16, #tpu.memory_space<vmem>>, vector<64x128xbf16>
    %cst_6 = arith.constant dense<0.000000e+00> : vector<64x128xf32>
    %16 = tpu.matmul %15, %14, %cst_6 {dimension_numbers = #tpu.dot_dimension_numbers<[1], [1], [0], [0], [0, 0, 1, 0], [], []>} : vector<64x128xbf16>, vector<128x128xbf16>, vector<64x128xf32> -> vector<64x128xf32>
    %c64_i32 = arith.constant 64 : i32
    %17 = arith.muli %arg0, %c64_i32 : i32
    %18 = tpu.iota {dimensions = array<i32: 0>} : vector<64x128xi32>
    %19 = vector.broadcast %17 : i32 to vector<64x128xi32>
    %20 = arith.addi %19, %18 : vector<64x128xi32>
    %c128_i32 = arith.constant 128 : i32
    %21 = arith.muli %arg1, %c128_i32 : i32
    %22 = tpu.iota {dimensions = array<i32: 1>} : vector<64x128xi32>
    %23 = vector.broadcast %21 : i32 to vector<64x128xi32>
    %24 = arith.addi %23, %22 : vector<64x128xi32>
    %c256_i32 = arith.constant 256 : i32
    %25 = vector.broadcast %c256_i32 : i32 to vector<64x128xi32>
    %26 = arith.cmpi slt, %24, %25 : vector<64x128xi32>
    %27 = arith.cmpi ne, %20, %24 : vector<64x128xi32>
    %28 = arith.andi %26, %27 : vector<64x128xi1>
    %c0_7 = arith.constant 0 : index
    %c0_8 = arith.constant 0 : index
    %29 = vector.load %arg4[%c0_7, %c0_8] : memref<64x1xi32, #tpu.memory_space<vmem>>, vector<64x1xi32>
    %c0_9 = arith.constant 0 : index
    %c0_10 = arith.constant 0 : index
    %30 = vector.load %arg5[%c0_9, %c0_10] : memref<1x128xi32, #tpu.memory_space<vmem>>, vector<1x128xi32>
    %31 = vector.broadcast %29 : vector<64x1xi32> to vector<64x128xi32>
    %32 = vector.broadcast %30 : vector<1x128xi32> to vector<64x128xi32>
    %33 = arith.cmpi eq, %31, %32 : vector<64x128xi32>
    %34 = arith.andi %28, %33 : vector<64x128xi1>
    %cst_11 = arith.constant -1.000000e+30 : f32
    %35 = vector.broadcast %cst_11 : f32 to vector<64x128xf32>
    %36 = arith.select %26, %16, %35 : vector<64x128xi1>, vector<64x128xf32>
    %cst_12 = arith.constant dense<0xFF800000> : vector<64xf32>
    %37 = vector.multi_reduction <maximumf>, %36, %cst_12 [1] : vector<64x128xf32> to vector<64xf32>
    %38 = vector.shape_cast %37 : vector<64xf32> to vector<64x1xf32>
    %c0_13 = arith.constant 0 : index
    %c0_14 = arith.constant 0 : index
    %39 = vector.load %arg8[%c0_13, %c0_14] : memref<64x1xf32, #tpu.memory_space<vmem>>, vector<64x1xf32>
    %40 = arith.maximumf %39, %38 : vector<64x1xf32>
    %c0_15 = arith.constant 0 : index
    %c0_16 = arith.constant 0 : index
    %41 = vector.load %arg8[%c0_15, %c0_16] : memref<64x1xf32, #tpu.memory_space<vmem>>, vector<64x1xf32>
    %42 = arith.subf %41, %40 : vector<64x1xf32>
    %43 = math.exp %42 : vector<64x1xf32>
    %44 = vector.broadcast %40 : vector<64x1xf32> to vector<64x128xf32>
    %45 = arith.subf %16, %44 : vector<64x128xf32>
    %46 = math.exp %45 : vector<64x128xf32>
    %cst_17 = arith.constant 0.000000e+00 : f32
    %47 = vector.broadcast %cst_17 : f32 to vector<64x128xf32>
    %48 = arith.select %28, %46, %47 : vector<64x128xi1>, vector<64x128xf32>
    %c0_18 = arith.constant 0 : index
    %c0_19 = arith.constant 0 : index
    %49 = vector.load %arg9[%c0_18, %c0_19] : memref<64x1xf32, #tpu.memory_space<vmem>>, vector<64x1xf32>
    %50 = arith.mulf %43, %49 : vector<64x1xf32>
    %cst_20 = arith.constant dense<0.000000e+00> : vector<64xf32>
    %51 = vector.multi_reduction <add>, %48, %cst_20 [1] : vector<64x128xf32> to vector<64xf32>
    %52 = vector.shape_cast %51 : vector<64xf32> to vector<64x1xf32>
    %53 = arith.addf %50, %52 : vector<64x1xf32>
    %c0_21 = arith.constant 0 : index
    %c0_22 = arith.constant 0 : index
    %54 = vector.load %arg9[%c0_21, %c0_22] : memref<64x1xf32, #tpu.memory_space<vmem>>, vector<64x1xf32>
    tpu.vector_store %arg9[%c0_21, %c0_22], %53 {strides = array<i32>} : memref<64x1xf32, #tpu.memory_space<vmem>>, vector<64x1xf32>,
    %c0_23 = arith.constant 0 : index
    %c0_24 = arith.constant 0 : index
    %55 = vector.load %arg10[%c0_23, %c0_24] : memref<64x1xf32, #tpu.memory_space<vmem>>, vector<64x1xf32>
    %cst_25 = arith.constant 0.000000e+00 : f32
    %56 = vector.broadcast %cst_25 : f32 to vector<64x128xf32>
    %57 = arith.select %34, %16, %56 : vector<64x128xi1>, vector<64x128xf32>
    %cst_26 = arith.constant dense<0.000000e+00> : vector<64xf32>
    %58 = vector.multi_reduction <add>, %57, %cst_26 [1] : vector<64x128xf32> to vector<64xf32>
    %59 = vector.shape_cast %58 : vector<64xf32> to vector<64x1xf32>
    %60 = arith.addf %55, %59 : vector<64x1xf32>
    %c0_27 = arith.constant 0 : index
    %c0_28 = arith.constant 0 : index
    %61 = vector.load %arg10[%c0_27, %c0_28] : memref<64x1xf32, #tpu.memory_space<vmem>>, vector<64x1xf32>
    tpu.vector_store %arg10[%c0_27, %c0_28], %60 {strides = array<i32>} : memref<64x1xf32, #tpu.memory_space<vmem>>, vector<64x1xf32>,
    %c0_29 = arith.constant 0 : index
    %c0_30 = arith.constant 0 : index
    %62 = vector.load %arg11[%c0_29, %c0_30] : memref<64x1xf32, #tpu.memory_space<vmem>>, vector<64x1xf32>
    %63 = arith.extui %34 : vector<64x128xi1> to vector<64x128xi32>
    %64 = arith.sitofp %63 : vector<64x128xi32> to vector<64x128xf32>
    %cst_31 = arith.constant dense<0.000000e+00> : vector<64xf32>
    %65 = vector.multi_reduction <add>, %64, %cst_31 [1] : vector<64x128xf32> to vector<64xf32>
    %66 = vector.shape_cast %65 : vector<64xf32> to vector<64x1xf32>
    %67 = arith.addf %62, %66 : vector<64x1xf32>
    %c0_32 = arith.constant 0 : index
    %c0_33 = arith.constant 0 : index
    %68 = vector.load %arg11[%c0_32, %c0_33] : memref<64x1xf32, #tpu.memory_space<vmem>>, vector<64x1xf32>
    tpu.vector_store %arg11[%c0_32, %c0_33], %67 {strides = array<i32>} : memref<64x1xf32, #tpu.memory_space<vmem>>, vector<64x1xf32>,
    %c0_34 = arith.constant 0 : index
    %c0_35 = arith.constant 0 : index
    %69 = vector.load %arg8[%c0_34, %c0_35] : memref<64x1xf32, #tpu.memory_space<vmem>>, vector<64x1xf32>
    tpu.vector_store %arg8[%c0_34, %c0_35], %40 {strides = array<i32>} : memref<64x1xf32, #tpu.memory_space<vmem>>, vector<64x1xf32>,
    %c1_i32 = arith.constant 1 : i32
    %70 = arith.cmpi eq, %arg1, %c1_i32 : i32
    %71 = arith.extui %70 : i1 to i32
    %c0_i32_36 = arith.constant 0 : i32
    %72 = arith.cmpi ne, %71, %c0_i32_36 : i32
    scf.if %72 {
      %c0_37 = arith.constant 0 : index
      %c0_38 = arith.constant 0 : index
      %73 = vector.load %arg11[%c0_37, %c0_38] : memref<64x1xf32, #tpu.memory_space<vmem>>, vector<64x1xf32>
      %cst_39 = arith.constant 9.99999997E-7 : f32
      %74 = vector.broadcast %cst_39 : f32 to vector<64x1xf32>
      %75 = arith.cmpf olt, %73, %74 : vector<64x1xf32>
      %cst_40 = arith.constant 1.000000e+00 : f32
      %76 = vector.broadcast %cst_40 : f32 to vector<64x1xf32>
      %77 = arith.select %75, %76, %73 : vector<64x1xi1>, vector<64x1xf32>
      %c0_41 = arith.constant 0 : index
      %c0_42 = arith.constant 0 : index
      %78 = vector.load %arg8[%c0_41, %c0_42] : memref<64x1xf32, #tpu.memory_space<vmem>>, vector<64x1xf32>
      %c0_43 = arith.constant 0 : index
      %c0_44 = arith.constant 0 : index
      %79 = vector.load %arg9[%c0_43, %c0_44] : memref<64x1xf32, #tpu.memory_space<vmem>>, vector<64x1xf32>
      %80 = math.log %79 : vector<64x1xf32>
      %81 = arith.addf %78, %80 : vector<64x1xf32>
      %c0_45 = arith.constant 0 : index
      %c0_46 = arith.constant 0 : index
      %82 = vector.load %arg10[%c0_45, %c0_46] : memref<64x1xf32, #tpu.memory_space<vmem>>, vector<64x1xf32>
      %83 = arith.mulf %73, %81 : vector<64x1xf32>
      %84 = arith.subf %82, %83 : vector<64x1xf32>
      %85 = arith.divf %84, %77 : vector<64x1xf32>
      %cst_47 = arith.constant -1.000000e+00 : f32
      %86 = vector.broadcast %cst_47 : f32 to vector<64x1xf32>
      %87 = arith.mulf %86, %85 : vector<64x1xf32>
      %c0_48 = arith.constant 0 : index
      %c0_49 = arith.constant 0 : index
      %88 = vector.load %arg6[%c0_48, %c0_49] : memref<64x1xf32, #tpu.memory_space<vmem>>, vector<64x1xf32>
      tpu.vector_store %arg6[%c0_48, %c0_49], %87 {strides = array<i32>} : memref<64x1xf32, #tpu.memory_space<vmem>>, vector<64x1xf32>,
    } else {
    }
    return
  }
  func.func @transform_0(%arg0: i32, %arg1: i32) -> (i32, i32) {
    %c0_i32 = arith.constant 0 : i32
    %c0_i32_0 = arith.constant 0 : i32
    return %arg0, %c0_i32 : i32, i32
  }
  func.func @transform_1(%arg0: i32, %arg1: i32) -> (i32, i32) {
    %c0_i32 = arith.constant 0 : i32
    %c0_i32_0 = arith.constant 0 : i32
    return %arg1, %c0_i32 : i32, i32
  }
  func.func @transform_2(%arg0: i32, %arg1: i32) -> (i32, i32) {
    %c0_i32 = arith.constant 0 : i32
    %c0_i32_0 = arith.constant 0 : i32
    return %arg0, %c0_i32 : i32, i32
  }
  func.func @transform_3(%arg0: i32, %arg1: i32) -> (i32, i32) {
    %c0_i32 = arith.constant 0 : i32
    %c0_i32_0 = arith.constant 0 : i32
    return %c0_i32, %arg1 : i32, i32
  }
  func.func @transform_4(%arg0: i32, %arg1: i32) -> (i32, i32) {
    %c0_i32 = arith.constant 0 : i32
    %c0_i32_0 = arith.constant 0 : i32
    return %arg0, %c0_i32 : i32, i32
  }
}

</mosaic_0001>

<llo_original>
// kernel: tpu_custom_call.1
$region0: #{tpu_custom_call.1}
  #allocation0 [shape = 'u32[]', space=smem, size = 0x4, offset = 0x4, fixed_abs, tag = 'smem constant byte address 0x4 - core index']
  #allocation1 [shape = 'u32[144,128]{1,0:T(1,128)}', space=vmem, size = 0x12000, scoped, tag = 'internal scratch']
  #allocation2 [shape = 'bf16[64,128]{1,0:T(16,128)(2,1)}', space=vmem, size = 0x4000, scoped, tag = 'scratch operand']
  #allocation3 [shape = 'f32[64,1]{1,0:T(8,128)}', space=vmem, size = 0x8000, scoped, tag = 'scratch operand']
  #allocation4 [shape = 'f32[64,1]{1,0:T(8,128)}', space=vmem, size = 0x8000, scoped, tag = 'scratch operand']
  #allocation5 [shape = 'f32[64,1]{1,0:T(8,128)}', space=vmem, size = 0x8000, scoped, tag = 'scratch operand']
  #allocation6 [shape = 'f32[64,1]{1,0:T(8,128)}', space=vmem, size = 0x8000, scoped, tag = 'scratch operand']
  %s0 = inlined_call_operand.hbm [shape: f32[256,128], index: 0, kind: input, shape index: {}]
  %s1 = inlined_call_operand.hbm [shape: f32[256,128], index: 1, kind: input, shape index: {}]
  %s2 = inlined_call_operand.hbm [shape: s32[256,1], index: 2, kind: input, shape index: {}]
  %s3 = inlined_call_operand.hbm [shape: s32[1,256], index: 3, kind: input, shape index: {}]
  %s4 = inlined_call_operand.hbm [shape: f32[256,1], index: 4, kind: output, shape index: {}]
  %s5 = sld [smem:[#allocation0]]
  $region73: #{tpu_custom_call.1} parent=0
    _
  %s7 = ssub.s32 1, %s5
  %s8 = scalar_select 0, %s7, %s5
  $region1: #{tpu_custom_call.1} parent=0
    #allocation7 [shape = 'u8[65536]{0}', space=vmem, size = 0x10000, scoped, tag = 'input window, operand 0']
    #allocation8 [shape = 's32[2]{0}', space=sflag, size = 0x8, scoped, tag = 'scoped memory for tpu_custom_call.1']
    #allocation9 [shape = 's32[2]{0}', space=sflag, size = 0x8, scoped, tag = 'scoped memory for tpu_custom_call.1']
    #allocation10 [shape = 'u8[131072]{0}', space=vmem, size = 0x20000, scoped, tag = 'input window, operand 1']
    #allocation11 [shape = 's32[2]{0}', space=sflag, size = 0x8, scoped, tag = 'scoped memory for tpu_custom_call.1']
    #allocation12 [shape = 'u8[65536]{0}', space=vmem, size = 0x10000, scoped, tag = 'input window, operand 2']
    #allocation13 [shape = 'u8[1024]{0}', space=vmem, size = 0x400, scoped, tag = 'input window, operand 3']
    #allocation14 [shape = 's32[2]{0}', space=sflag, size = 0x8, scoped, tag = 'scoped memory for tpu_custom_call.1']
    #allocation15 [shape = 'u8[65536]{0}', space=vmem, size = 0x10000, scoped, tag = 'output window, operand 0']
    %9 = vsyncpa [#allocation8], 0
    %s10 = scalar_lea.sflag [#allocation8], 1
    %11 = vsyncpa %s10, 0
    %12 = vsyncpa [#allocation11], 0
    %s13 = scalar_lea.sflag [#allocation11], 1
    %14 = vsyncpa %s13, 0
    %15 = vsyncpa [#allocation14], 0
    %s16 = scalar_lea.sflag [#allocation14], 1
    %17 = vsyncpa %s16, 0
    %18 = vsyncpa [#allocation9], 0
    %s19 = scalar_lea.sflag [#allocation9], 1
    %20 = vsyncpa %s19, 0
    loop: start=0, step=1, limit=10
    $region2: #{tpu_custom_call.1} parent=1 // loop_pre_header
      _
    $region3: #{tpu_custom_call.1} parent=1 // loop_header
      %s22 = sphi 0, %s26
      %p23 = scmp.ge.s32.totalorder %s22, 10
      %s29 = sphi 0, %s41
      %s30 = sphi 0, %s37
      %s31 = sphi 0, %s29
      %s32 = sphi 0, %s30
      %s33 = sphi 0, %s31
      %s34 = sphi 0, %s32
      %s44 = sphi 0, %s46
      %s47 = sphi 0, %s44
      %s48 = sphi 0, %s47
      %s64 = sphi 0, %s48
      %s70 = sphi 0, %s72
      %s73 = sphi 0, %s70
      %s74 = sphi 0, %s73
      %s90 = sphi 0, %s74
      %s96 = sphi 0, %s98
      %s99 = sphi 0, %s96
      %s100 = sphi 0, %s99
      %s116 = sphi 0, %s100
      %s122 = sphi 0, %s124
      %s125 = sphi 0, %s122
      %s126 = sphi 0, %s125
      %s142 = sphi 0, %s126
      %s148 = sphi 0, %s150
      %s151 = sphi 0, %s148
      %s152 = sphi 0, %s151
      %s168 = sphi 0, %s152
    $region4: #{tpu_custom_call.1} parent=1 // loop_header_branch
      %25 = sbr.rel (%p23) target = $region8
    $region5: #{tpu_custom_call.1} parent=1 // loop_body
      %s27 = ssub.s32 %s22, 1
      %s28 = ssub.s32 %s22, 2
      %s35 = sadd.s32 1, %s30
      %p36 = scmp.ge.s32.totalorder %s35, 2
      %s37 = scalar_select %p36, 0, %s35
      %s38 = sadd.s32 1, %s29
      %s39 = scalar_select %p36, %s38, %s29
      %p40 = scmp.ge.s32.totalorder %s39, 4
      %s41 = scalar_select %p40, 0, %s39
      %s42 = ssub.s32 %s29, %s41
      %p43 = scmp.eq.s32.totalorder %s42, 0
      %s45 = sadd.s32 %s44, 1
      %s46 = scalar_select %p43, %s44, %s45
      %p49 = pneg %p43
      %p50 = scmp.eq.s32.totalorder %s22, 7
      %p51 = por %p49, %p50
      %p52 = scmp.ne.s32.totalorder %s44, %s47
      %p53 = scmp.eq.s32.totalorder %s22, 0
      %p54 = por %p52, %p53
      %p55 = scmp.ne.s32.totalorder %s44, %s47
      %p56 = scmp.eq.s32.totalorder %s27, 7
      %p57 = por %p55, %p56
      %p58 = scmp.ne.s32.totalorder %s47, %s48
      %p59 = scmp.eq.s32.totalorder %s27, 0
      %p60 = por %p58, %p59
      %p61 = scmp.ne.s32.totalorder %s47, %s48
      %p62 = scmp.eq.s32.totalorder %s28, 7
      %p63 = por %p61, %p62
      %p65 = scmp.ne.s32.totalorder %s48, %s64
      %p66 = scmp.eq.s32.totalorder %s28, 0
      %p67 = por %p65, %p66
      %s68 = ssub.s32 %s30, %s37
      %p69 = scmp.eq.s32.totalorder %s68, 0
      %s71 = sadd.s32 %s70, 1
      %s72 = scalar_select %p69, %s70, %s71
      %p75 = pneg %p69
      %p76 = scmp.eq.s32.totalorder %s22, 7
      %p77 = por %p75, %p76
      %p78 = scmp.ne.s32.totalorder %s70, %s73
      %p79 = scmp.eq.s32.totalorder %s22, 0
      %p80 = por %p78, %p79
      %p81 = scmp.ne.s32.totalorder %s70, %s73
      %p82 = scmp.eq.s32.totalorder %s27, 7
      %p83 = por %p81, %p82
      %p84 = scmp.ne.s32.totalorder %s73, %s74
      %p85 = scmp.eq.s32.totalorder %s27, 0
      %p86 = por %p84, %p85
      %p87 = scmp.ne.s32.totalorder %s73, %s74
      %p88 = scmp.eq.s32.totalorder %s28, 7
      %p89 = por %p87, %p88
      %p91 = scmp.ne.s32.totalorder %s74, %s90
      %p92 = scmp.eq.s32.totalorder %s28, 0
      %p93 = por %p91, %p92
      %s94 = ssub.s32 %s29, %s41
      %p95 = scmp.eq.s32.totalorder %s94, 0
      %s97 = sadd.s32 %s96, 1
      %s98 = scalar_select %p95, %s96, %s97
      %p101 = pneg %p95
      %p102 = scmp.eq.s32.totalorder %s22, 7
      %p103 = por %p101, %p102
      %p104 = scmp.ne.s32.totalorder %s96, %s99
      %p105 = scmp.eq.s32.totalorder %s22, 0
      %p106 = por %p104, %p105
      %p107 = scmp.ne.s32.totalorder %s96, %s99
      %p108 = scmp.eq.s32.totalorder %s27, 7
      %p109 = por %p107, %p108
      %p110 = scmp.ne.s32.totalorder %s99, %s100
      %p111 = scmp.eq.s32.totalorder %s27, 0
      %p112 = por %p110, %p111
      %p113 = scmp.ne.s32.totalorder %s99, %s100
      %p114 = scmp.eq.s32.totalorder %s28, 7
      %p115 = por %p113, %p114
      %p117 = scmp.ne.s32.totalorder %s100, %s116
      %p118 = scmp.eq.s32.totalorder %s28, 0
      %p119 = por %p117, %p118
      %s120 = ssub.s32 %s30, %s37
      %p121 = scmp.eq.s32.totalorder %s120, 0
      %s123 = sadd.s32 %s122, 1
      %s124 = scalar_select %p121, %s122, %s123
      %p127 = pneg %p121
      %p128 = scmp.eq.s32.totalorder %s22, 7
      %p129 = por %p127, %p128
      %p130 = scmp.ne.s32.totalorder %s122, %s125
      %p131 = scmp.eq.s32.totalorder %s22, 0
      %p132 = por %p130, %p131
      %p133 = scmp.ne.s32.totalorder %s122, %s125
      %p134 = scmp.eq.s32.totalorder %s27, 7
      %p135 = por %p133, %p134
      %p136 = scmp.ne.s32.totalorder %s125, %s126
      %p137 = scmp.eq.s32.totalorder %s27, 0
      %p138 = por %p136, %p137
      %p139 = scmp.ne.s32.totalorder %s125, %s126
      %p140 = scmp.eq.s32.totalorder %s28, 7
      %p141 = por %p139, %p140
      %p143 = scmp.ne.s32.totalorder %s126, %s142
      %p144 = scmp.eq.s32.totalorder %s28, 0
      %p145 = por %p143, %p144
      %s146 = ssub.s32 %s29, %s41
      %p147 = scmp.eq.s32.totalorder %s146, 0
      %s149 = sadd.s32 %s148, 1
      %s150 = scalar_select %p147, %s148, %s149
      %p153 = pneg %p147
      %p154 = scmp.eq.s32.totalorder %s22, 7
      %p155 = por %p153, %p154
      %p156 = scmp.ne.s32.totalorder %s148, %s151
      %p157 = scmp.eq.s32.totalorder %s22, 0
      %p158 = por %p156, %p157
      %p159 = scmp.ne.s32.totalorder %s148, %s151
      %p160 = scmp.eq.s32.totalorder %s27, 7
      %p161 = por %p159, %p160
      %p162 = scmp.ne.s32.totalorder %s151, %s152
      %p163 = scmp.eq.s32.totalorder %s27, 0
      %p164 = por %p162, %p163
      %p165 = scmp.ne.s32.totalorder %s151, %s152
      %p166 = scmp.eq.s32.totalorder %s28, 7
      %p167 = por %p165, %p166
      %p169 = scmp.ne.s32.totalorder %s152, %s168
      %p170 = scmp.eq.s32.totalorder %s28, 0
      %p171 = por %p169, %p170
      %p172 = scmp.le.s32.totalorder 1, %s22
      %p173 = scmp.lt.s32.totalorder %s22, 9
      %p174 = pnand %p172, %p173
      %p175 = pneg %p174
      // Predicated region
      $region9: #{tpu_custom_call.1} parent=5 // pred_check
        _
      $region10: #{tpu_custom_call.1} parent=5 // pred_check_branch
        %177 = sbr.rel (%p174) target = $region12
      $region11: #{tpu_custom_call.1} parent=5 // pred_region
        %s178 = ssub.s32 %s22, 1
      $region12: #{tpu_custom_call.1} parent=5 // pred_fallthru
        _
      %p179 = scmp.lt.s32.totalorder %s22, 8
      // Predicated region
      $region13: #{tpu_custom_call.1} parent=5 // pred_check
        %p180 = pneg %p179
      $region14: #{tpu_custom_call.1} parent=5 // pred_check_branch
        %182 = sbr.rel (%p180) target = $region16
      $region15: #{tpu_custom_call.1} parent=5 // pred_region
        // Predicated region
        $region17: #{tpu_custom_call.1} parent=15 // pred_check
          %p183 = pneg %p54
        $region18: #{tpu_custom_call.1} parent=15 // pred_check_branch
          %185 = sbr.rel (%p183) target = $region20
        $region19: #{tpu_custom_call.1} parent=15 // pred_region
          %s186 = sand.u32 %s44, 1
          %s187 = scalar_lea.sflag [#allocation8], %s186
          %s188 = sand.u32 %s44, 1
          %s189 = smul.addr %s188, 64
          %s190 = scalar_lea.vmem [#allocation7], %s189
          %s191 = smul.u32 8, %s29
          %s193 = ssub.s32 1024, 1024
          %194 = vsyncadd %s187, %s193
          %s195 = smul.addr %s191, 128
          %s196 = scalar_lea.hbm %s0, %s195
          %s197 = sshll.u32 %s190, 4
          %s198 = int_to_ptr.vmem [resolvable:$true] %s197
          %203 = dma.hbm_to_vmem [thread:$0]  %s196, 1024, %s198, %s187, 128, 128, 8
        $region20: #{tpu_custom_call.1} parent=15 // pred_fallthru
          _
        // Predicated region
        $region21: #{tpu_custom_call.1} parent=15 // pred_check
          %p204 = pneg %p80
        $region22: #{tpu_custom_call.1} parent=15 // pred_check_branch
          %206 = sbr.rel (%p204) target = $region24
        $region23: #{tpu_custom_call.1} parent=15 // pred_region
          %s207 = sand.u32 %s22, 1
          %s208 = scalar_lea.sflag [#allocation11], %s207
          %s209 = sand.u32 %s70, 1
          %s210 = smul.addr %s209, 128
          %s211 = scalar_lea.vmem [#allocation10], %s210
          %s212 = smul.u32 16, %s30
          %s214 = ssub.s32 2048, 2048
          %215 = vsyncadd %s208, %s214
          %s216 = smul.addr %s212, 128
          %s217 = scalar_lea.hbm %s1, %s216
          %s218 = sshll.u32 %s211, 4
          %s219 = int_to_ptr.vmem [resolvable:$true] %s218
          %224 = dma.hbm_to_vmem [thread:$0]  %s217, 2048, %s219, %s208, 128, 128, 8
        $region24: #{tpu_custom_call.1} parent=15 // pred_fallthru
          _
        // Predicated region
        $region25: #{tpu_custom_call.1} parent=15 // pred_check
          %p225 = pneg %p106
        $region26: #{tpu_custom_call.1} parent=15 // pred_check_branch
          %227 = sbr.rel (%p225) target = $region28
        $region27: #{tpu_custom_call.1} parent=15 // pred_region
          %s228 = sand.u32 %s22, 1
          %s229 = scalar_lea.sflag [#allocation11], %s228
          %s230 = sand.u32 %s96, 1
          %s231 = smul.addr %s230, 64
          %s232 = scalar_lea.vmem [#allocation12], %s231
          %s233 = smul.u32 8, %s29
          %s235 = ssub.s32 1024, 1024
          %236 = vsyncadd %s229, %s235
          %s237 = smul.addr %s233, 128
          %s238 = scalar_lea.hbm %s2, %s237
          %s239 = sshll.u32 %s232, 4
          %s240 = int_to_ptr.vmem [resolvable:$true] %s239
          %245 = dma.hbm_to_vmem [thread:$0]  %s238, 1024, %s240, %s229, 128, 128, 8
        $region28: #{tpu_custom_call.1} parent=15 // pred_fallthru
          _
        // Predicated region
        $region29: #{tpu_custom_call.1} parent=15 // pred_check
          %p246 = pneg %p132
        $region30: #{tpu_custom_call.1} parent=15 // pred_check_branch
          %248 = sbr.rel (%p246) target = $region32
        $region31: #{tpu_custom_call.1} parent=15 // pred_region
          %s249 = sand.u32 %s122, 1
          %s250 = scalar_lea.sflag [#allocation14], %s249
          %s251 = sand.u32 %s122, 1
          %s252 = scalar_lea.vmem [#allocation13], %s251
          %s254 = ssub.s32 16, 16
          %255 = vsyncadd %s250, %s254
          %s256 = smul.addr %s30, 16
          %s257 = scalar_lea.hbm %s3, %s256
          %s259 = sshll.u32 %s252, 4
          %s260 = int_to_ptr.vmem [resolvable:$true] %s259
          %262 = dma.hbm_to_vmem [thread:$0]  %s257, 16, %s260, %s250
        $region32: #{tpu_custom_call.1} parent=15 // pred_fallthru
          _
      $region16: #{tpu_custom_call.1} parent=5 // pred_fallthru
        _
      %p263 = scmp.le.s32.totalorder 1, %s22
      %p264 = scmp.lt.s32.totalorder %s22, 9
      %p265 = pnand %p263, %p264
      %p266 = pneg %p265
      // Predicated region
      $region33: #{tpu_custom_call.1} parent=5 // pred_check
        _
      $region34: #{tpu_custom_call.1} parent=5 // pred_check_branch
        %268 = sbr.rel (%p265) target = $region36
      $region35: #{tpu_custom_call.1} parent=5 // pred_region
        %s269 = ssub.s32 %s22, 1
        %s270 = sand.u32 %s47, 1
        %s271 = scalar_lea.sflag [#allocation8], %s270
        %s272 = sand.u32 %s47, 1
        %s273 = smul.addr %s272, 64
        %s274 = scalar_lea.vmem [#allocation7], %s273
        // Predicated region
        $region37: #{tpu_custom_call.1} parent=35 // pred_check
          %p275 = pneg %p60
        $region38: #{tpu_custom_call.1} parent=35 // pred_check_branch
          %277 = sbr.rel (%p275) target = $region40
        $region39: #{tpu_custom_call.1} parent=35 // pred_region
          %278 = dma.done %s271, 1024
        $region40: #{tpu_custom_call.1} parent=35 // pred_fallthru
          _
        %s279 = sand.u32 %s27, 1
        %s280 = scalar_lea.sflag [#allocation11], %s279
        %s281 = sand.u32 %s73, 1
        %s282 = smul.addr %s281, 128
        %s283 = scalar_lea.vmem [#allocation10], %s282
        // Predicated region
        $region41: #{tpu_custom_call.1} parent=35 // pred_check
          %p284 = pneg %p86
        $region42: #{tpu_custom_call.1} parent=35 // pred_check_branch
          %286 = sbr.rel (%p284) target = $region44
        $region43: #{tpu_custom_call.1} parent=35 // pred_region
          %287 = dma.done %s280, 2048
        $region44: #{tpu_custom_call.1} parent=35 // pred_fallthru
          _
        %s288 = sand.u32 %s27, 1
        %s289 = scalar_lea.sflag [#allocation11], %s288
        %s290 = sand.u32 %s99, 1
        %s291 = smul.addr %s290, 64
        %s292 = scalar_lea.vmem [#allocation12], %s291
        // Predicated region
        $region45: #{tpu_custom_call.1} parent=35 // pred_check
          %p293 = pneg %p112
        $region46: #{tpu_custom_call.1} parent=35 // pred_check_branch
          %295 = sbr.rel (%p293) target = $region48
        $region47: #{tpu_custom_call.1} parent=35 // pred_region
          %296 = dma.done %s289, 1024
        $region48: #{tpu_custom_call.1} parent=35 // pred_fallthru
          _
        %s297 = sand.u32 %s125, 1
        %s298 = scalar_lea.sflag [#allocation14], %s297
        %s299 = sand.u32 %s125, 1
        %s300 = scalar_lea.vmem [#allocation13], %s299
        // Predicated region
        $region49: #{tpu_custom_call.1} parent=35 // pred_check
          %p301 = pneg %p138
        $region50: #{tpu_custom_call.1} parent=35 // pred_check_branch
          %303 = sbr.rel (%p301) target = $region52
        $region51: #{tpu_custom_call.1} parent=35 // pred_region
          %304 = dma.done %s298, 16
        $region52: #{tpu_custom_call.1} parent=35 // pred_fallthru
          _
        %s305 = sand.u32 %s47, 1
        %s306 = scalar_lea.sflag [#allocation8], %s305
        %s307 = sand.u32 %s47, 1
        %s308 = smul.addr %s307, 64
        %s309 = scalar_lea.vmem [#allocation7], %s308
        %p310 = pneg %p60
        %p311 = pneg %p57
        %s312 = sand.u32 %s27, 1
        %s313 = scalar_lea.sflag [#allocation11], %s312
        %s314 = sand.u32 %s73, 1
        %s315 = smul.addr %s314, 128
        %s316 = scalar_lea.vmem [#allocation10], %s315
        %p317 = pneg %p86
        %p318 = pneg %p83
        %s319 = sand.u32 %s27, 1
        %s320 = scalar_lea.sflag [#allocation11], %s319
        %s321 = sand.u32 %s99, 1
        %s322 = smul.addr %s321, 64
        %s323 = scalar_lea.vmem [#allocation12], %s322
        %p324 = pneg %p112
        %p325 = pneg %p109
        %s326 = sand.u32 %s125, 1
        %s327 = scalar_lea.sflag [#allocation14], %s326
        %s328 = sand.u32 %s125, 1
        %s329 = scalar_lea.vmem [#allocation13], %s328
        %p330 = pneg %p138
        %p331 = pneg %p135
        %p332 = pneg %p164
        %p333 = pneg %p161
        %s334 = sand.u32 %s151, 1
        %s335 = scalar_lea.sflag [#allocation9], %s334
        %s336 = sand.u32 %s151, 1
        %s337 = smul.addr %s336, 64
        %s338 = scalar_lea.vmem [#allocation15], %s337
        %s339 = smul.u32 8, %s31
        %s340 = smul.u32 16, %s32
        %s341 = smul.u32 8, %s31
        %s342 = smul.u32 8, %s31
        %p344 = scmp.eq.s32.totalorder %s32, 0
        // Predicated region
        $region53: #{tpu_custom_call.1} parent=35 // pred_check
          %p345 = pneg %p344
        $region54: #{tpu_custom_call.1} parent=35 // pred_check_branch
          %347 = sbr.rel (%p345) target = $region56
        $region55: #{tpu_custom_call.1} parent=35 // pred_region
          %v348 = vld [vmem:[%s274] sm:$0xff]
          %v349 = vld [vmem:[%s274 + $0x8] sm:$0xff]
          %v350 = vld [vmem:[%s274 + $0x10] sm:$0xff]
          %v351 = vld [vmem:[%s274 + $0x18] sm:$0xff]
          %v352 = vld [vmem:[%s274 + $0x20] sm:$0xff]
          %v353 = vld [vmem:[%s274 + $0x28] sm:$0xff]
          %v354 = vld [vmem:[%s274 + $0x30] sm:$0xff]
          %v355 = vld [vmem:[%s274 + $0x38] sm:$0xff]
          %v356 = vmul.f32 %v348, %v348
          %v357 = vmul.f32 %v349, %v349
          %v358 = vmul.f32 %v350, %v350
          %v359 = vmul.f32 %v351, %v351
          %v360 = vmul.f32 %v352, %v352
          %v361 = vmul.f32 %v353, %v353
          %v362 = vmul.f32 %v354, %v354
          %v363 = vmul.f32 %v355, %v355
          %364 = vadd.xlane.f32.xlu0 %v356
          %v365 = vpop.xlane.xlu0 %364
          %366 = vadd.xlane.f32.xlu0 %v357
          %v367 = vpop.xlane.xlu0 %366
          %368 = vadd.xlane.f32.xlu0 %v358
          %v369 = vpop.xlane.xlu0 %368
          %370 = vadd.xlane.f32.xlu0 %v359
          %v371 = vpop.xlane.xlu0 %370
          %372 = vadd.xlane.f32.xlu0 %v360
          %v373 = vpop.xlane.xlu0 %372
          %374 = vadd.xlane.f32.xlu0 %v361
          %v375 = vpop.xlane.xlu0 %374
          %376 = vadd.xlane.f32.xlu0 %v362
          %v377 = vpop.xlane.xlu0 %376
          %378 = vadd.xlane.f32.xlu0 %v363
          %v379 = vpop.xlane.xlu0 %378
          %v380 = vmax.f32 %v365, 1e-24
          %v381 = vmax.f32 %v367, 1e-24
          %v382 = vmax.f32 %v369, 1e-24
          %v383 = vmax.f32 %v371, 1e-24
          %v384 = vmax.f32 %v373, 1e-24
          %v385 = vmax.f32 %v375, 1e-24
          %v386 = vmax.f32 %v377, 1e-24
          %v387 = vmax.f32 %v379, 1e-24
          %v388 = vrsqrt.pop %v380
          %v389 = vrsqrt.pop %v381
          %v390 = vrsqrt.pop %v382
          %v391 = vrsqrt.pop %v383
          %v392 = vrsqrt.pop %v384
          %v393 = vrsqrt.pop %v385
          %v394 = vrsqrt.pop %v386
          %v395 = vrsqrt.pop %v387
          %v396 = vmul.f32 %v388, 3.7796447
          %v397 = vmul.f32 %v389, 3.7796447
          %v398 = vmul.f32 %v390, 3.7796447
          %v399 = vmul.f32 %v391, 3.7796447
          %v400 = vmul.f32 %v392, 3.7796447
          %v401 = vmul.f32 %v393, 3.7796447
          %v402 = vmul.f32 %v394, 3.7796447
          %v403 = vmul.f32 %v395, 3.7796447
          %v404 = vmul.f32 %v348, %v396
          %v405 = vmul.f32 %v349, %v397
          %v406 = vmul.f32 %v350, %v398
          %v407 = vmul.f32 %v351, %v399
          %v408 = vmul.f32 %v352, %v400
          %v409 = vmul.f32 %v353, %v401
          %v410 = vmul.f32 %v354, %v402
          %v411 = vmul.f32 %v355, %v403
          %v412 = vpack.c.bf16 %v405, %v404
          %v413 = vpack.c.bf16 %v407, %v406
          %v414 = vpack.c.bf16 %v409, %v408
          %v415 = vpack.c.bf16 %v411, %v410
          %416 = vst [vmem:[#allocation2] sm:$0xff] %v412
          %417 = vst [vmem:[#allocation2 + $0x8] sm:$0xff] %v413
          %418 = vst [vmem:[#allocation2 + $0x10] sm:$0xff] %v414
          %419 = vst [vmem:[#allocation2 + $0x18] sm:$0xff] %v415
          %vm420 = vcmask 7168
          %421 = vst.msk [vmem:[#allocation3] sm:$0xff] %vm420, -inf
          %422 = vst.msk [vmem:[#allocation3 + $0x8] sm:$0xff] %vm420, -inf
          %423 = vst.msk [vmem:[#allocation3 + $0x10] sm:$0xff] %vm420, -inf
          %424 = vst.msk [vmem:[#allocation3 + $0x18] sm:$0xff] %vm420, -inf
          %425 = vst.msk [vmem:[#allocation3 + $0x20] sm:$0xff] %vm420, -inf
          %426 = vst.msk [vmem:[#allocation3 + $0x28] sm:$0xff] %vm420, -inf
          %427 = vst.msk [vmem:[#allocation3 + $0x30] sm:$0xff] %vm420, -inf
          %428 = vst.msk [vmem:[#allocation3 + $0x38] sm:$0xff] %vm420, -inf
          %429 = vst.msk [vmem:[#allocation4] sm:$0xff] %vm420, 0.0
          %430 = vst.msk [vmem:[#allocation4 + $0x8] sm:$0xff] %vm420, 0.0
          %431 = vst.msk [vmem:[#allocation4 + $0x10] sm:$0xff] %vm420, 0.0
          %432 = vst.msk [vmem:[#allocation4 + $0x18] sm:$0xff] %vm420, 0.0
          %433 = vst.msk [vmem:[#allocation4 + $0x20] sm:$0xff] %vm420, 0.0
          %434 = vst.msk [vmem:[#allocation4 + $0x28] sm:$0xff] %vm420, 0.0
          %435 = vst.msk [vmem:[#allocation4 + $0x30] sm:$0xff] %vm420, 0.0
          %436 = vst.msk [vmem:[#allocation4 + $0x38] sm:$0xff] %vm420, 0.0
          %437 = vst.msk [vmem:[#allocation5] sm:$0xff] %vm420, 0.0
          %438 = vst.msk [vmem:[#allocation5 + $0x8] sm:$0xff] %vm420, 0.0
          %439 = vst.msk [vmem:[#allocation5 + $0x10] sm:$0xff] %vm420, 0.0
          %440 = vst.msk [vmem:[#allocation5 + $0x18] sm:$0xff] %vm420, 0.0
          %441 = vst.msk [vmem:[#allocation5 + $0x20] sm:$0xff] %vm420, 0.0
          %442 = vst.msk [vmem:[#allocation5 + $0x28] sm:$0xff] %vm420, 0.0
          %443 = vst.msk [vmem:[#allocation5 + $0x30] sm:$0xff] %vm420, 0.0
          %444 = vst.msk [vmem:[#allocation5 + $0x38] sm:$0xff] %vm420, 0.0
          %445 = vst.msk [vmem:[#allocation6] sm:$0xff] %vm420, 0.0
          %446 = vst.msk [vmem:[#allocation6 + $0x8] sm:$0xff] %vm420, 0.0
          %447 = vst.msk [vmem:[#allocation6 + $0x10] sm:$0xff] %vm420, 0.0
          %448 = vst.msk [vmem:[#allocation6 + $0x18] sm:$0xff] %vm420, 0.0
          %449 = vst.msk [vmem:[#allocation6 + $0x20] sm:$0xff] %vm420, 0.0
          %450 = vst.msk [vmem:[#allocation6 + $0x28] sm:$0xff] %vm420, 0.0
          %451 = vst.msk [vmem:[#allocation6 + $0x30] sm:$0xff] %vm420, 0.0
          %452 = vst.msk [vmem:[#allocation6 + $0x38] sm:$0xff] %vm420, 0.0
        $region56: #{tpu_custom_call.1} parent=35 // pred_fallthru
          _
        %v453 = vld [vmem:[%s283] sm:$0xff]
        %v454 = vld [vmem:[%s283 + $0x8] sm:$0xff]
        %v455 = vld [vmem:[%s283 + $0x10] sm:$0xff]
        %v456 = vld [vmem:[%s283 + $0x18] sm:$0xff]
        %v457 = vld [vmem:[%s283 + $0x20] sm:$0xff]
        %v458 = vld [vmem:[%s283 + $0x28] sm:$0xff]
        %v459 = vld [vmem:[%s283 + $0x30] sm:$0xff]
        %v460 = vld [vmem:[%s283 + $0x38] sm:$0xff]
        %v461 = vld [vmem:[%s283 + $0x40] sm:$0xff]
        %v462 = vld [vmem:[%s283 + $0x48] sm:$0xff]
        %v463 = vld [vmem:[%s283 + $0x50] sm:$0xff]
        %v464 = vld [vmem:[%s283 + $0x58] sm:$0xff]
        %v465 = vld [vmem:[%s283 + $0x60] sm:$0xff]
        %v466 = vld [vmem:[%s283 + $0x68] sm:$0xff]
        %v467 = vld [vmem:[%s283 + $0x70] sm:$0xff]
        %v468 = vld [vmem:[%s283 + $0x78] sm:$0xff]
        %v469 = vmul.f32 %v453, %v453
        %v470 = vmul.f32 %v454, %v454
        %v471 = vmul.f32 %v455, %v455
        %v472 = vmul.f32 %v456, %v456
        %v473 = vmul.f32 %v457, %v457
        %v474 = vmul.f32 %v458, %v458
        %v475 = vmul.f32 %v459, %v459
        %v476 = vmul.f32 %v460, %v460
        %v477 = vmul.f32 %v461, %v461
        %v478 = vmul.f32 %v462, %v462
        %v479 = vmul.f32 %v463, %v463
        %v480 = vmul.f32 %v464, %v464
        %v481 = vmul.f32 %v465, %v465
        %v482 = vmul.f32 %v466, %v466
        %v483 = vmul.f32 %v467, %v467
        %v484 = vmul.f32 %v468, %v468
        %485 = vadd.xlane.f32.xlu0 %v469
        %v486 = vpop.xlane.xlu0 %485
        %487 = vadd.xlane.f32.xlu0 %v470
        %v488 = vpop.xlane.xlu0 %487
        %489 = vadd.xlane.f32.xlu0 %v471
        %v490 = vpop.xlane.xlu0 %489
        %491 = vadd.xlane.f32.xlu0 %v472
        %v492 = vpop.xlane.xlu0 %491
        %493 = vadd.xlane.f32.xlu0 %v473
        %v494 = vpop.xlane.xlu0 %493
        %495 = vadd.xlane.f32.xlu0 %v474
        %v496 = vpop.xlane.xlu0 %495
        %497 = vadd.xlane.f32.xlu0 %v475
        %v498 = vpop.xlane.xlu0 %497
        %499 = vadd.xlane.f32.xlu0 %v476
        %v500 = vpop.xlane.xlu0 %499
        %501 = vadd.xlane.f32.xlu0 %v477
        %v502 = vpop.xlane.xlu0 %501
        %503 = vadd.xlane.f32.xlu0 %v478
        %v504 = vpop.xlane.xlu0 %503
        %505 = vadd.xlane.f32.xlu0 %v479
        %v506 = vpop.xlane.xlu0 %505
        %507 = vadd.xlane.f32.xlu0 %v480
        %v508 = vpop.xlane.xlu0 %507
        %509 = vadd.xlane.f32.xlu0 %v481
        %v510 = vpop.xlane.xlu0 %509
        %511 = vadd.xlane.f32.xlu0 %v482
        %v512 = vpop.xlane.xlu0 %511
        %513 = vadd.xlane.f32.xlu0 %v483
        %v514 = vpop.xlane.xlu0 %513
        %515 = vadd.xlane.f32.xlu0 %v484
        %v516 = vpop.xlane.xlu0 %515
        %v517 = vmax.f32 %v486, 1e-24
        %v518 = vmax.f32 %v488, 1e-24
        %v519 = vmax.f32 %v490, 1e-24
        %v520 = vmax.f32 %v492, 1e-24
        %v521 = vmax.f32 %v494, 1e-24
        %v522 = vmax.f32 %v496, 1e-24
        %v523 = vmax.f32 %v498, 1e-24
        %v524 = vmax.f32 %v500, 1e-24
        %v525 = vmax.f32 %v502, 1e-24
        %v526 = vmax.f32 %v504, 1e-24
        %v527 = vmax.f32 %v506, 1e-24
        %v528 = vmax.f32 %v508, 1e-24
        %v529 = vmax.f32 %v510, 1e-24
        %v530 = vmax.f32 %v512, 1e-24
        %v531 = vmax.f32 %v514, 1e-24
        %v532 = vmax.f32 %v516, 1e-24
        %v533 = vrsqrt.pop %v517
        %v534 = vrsqrt.pop %v518
        %v535 = vrsqrt.pop %v519
        %v536 = vrsqrt.pop %v520
        %v537 = vrsqrt.pop %v521
        %v538 = vrsqrt.pop %v522
        %v539 = vrsqrt.pop %v523
        %v540 = vrsqrt.pop %v524
        %v541 = vrsqrt.pop %v525
        %v542 = vrsqrt.pop %v526
        %v543 = vrsqrt.pop %v527
        %v544 = vrsqrt.pop %v528
        %v545 = vrsqrt.pop %v529
        %v546 = vrsqrt.pop %v530
        %v547 = vrsqrt.pop %v531
        %v548 = vrsqrt.pop %v532
        %v549 = vmul.f32 %v533, 3.7796447
        %v550 = vmul.f32 %v534, 3.7796447
        %v551 = vmul.f32 %v535, 3.7796447
        %v552 = vmul.f32 %v536, 3.7796447
        %v553 = vmul.f32 %v537, 3.7796447
        %v554 = vmul.f32 %v538, 3.7796447
        %v555 = vmul.f32 %v539, 3.7796447
        %v556 = vmul.f32 %v540, 3.7796447
        %v557 = vmul.f32 %v541, 3.7796447
        %v558 = vmul.f32 %v542, 3.7796447
        %v559 = vmul.f32 %v543, 3.7796447
        %v560 = vmul.f32 %v544, 3.7796447
        %v561 = vmul.f32 %v545, 3.7796447
        %v562 = vmul.f32 %v546, 3.7796447
        %v563 = vmul.f32 %v547, 3.7796447
        %v564 = vmul.f32 %v548, 3.7796447
        %v565 = vmul.f32 %v453, %v549
        %v566 = vmul.f32 %v454, %v550
        %v567 = vmul.f32 %v455, %v551
        %v568 = vmul.f32 %v456, %v552
        %v569 = vmul.f32 %v457, %v553
        %v570 = vmul.f32 %v458, %v554
        %v571 = vmul.f32 %v459, %v555
        %v572 = vmul.f32 %v460, %v556
        %v573 = vmul.f32 %v461, %v557
        %v574 = vmul.f32 %v462, %v558
        %v575 = vmul.f32 %v463, %v559
        %v576 = vmul.f32 %v464, %v560
        %v577 = vmul.f32 %v465, %v561
        %v578 = vmul.f32 %v466, %v562
        %v579 = vmul.f32 %v467, %v563
        %v580 = vmul.f32 %v468, %v564
        %v581 = vpack.c.bf16 %v566, %v565
        %v582 = vpack.c.bf16 %v568, %v567
        %v583 = vpack.c.bf16 %v570, %v569
        %v584 = vpack.c.bf16 %v572, %v571
        %v585 = vpack.c.bf16 %v574, %v573
        %v586 = vpack.c.bf16 %v576, %v575
        %v587 = vpack.c.bf16 %v578, %v577
        %v588 = vpack.c.bf16 %v580, %v579
        %v589 = vld [vmem:[#allocation2] sm:$0xff]
        %v590 = vld [vmem:[#allocation2 + $0x8] sm:$0xff]
        %v591 = vld [vmem:[#allocation2 + $0x10] sm:$0xff]
        %v592 = vld [vmem:[#allocation2 + $0x18] sm:$0xff]
        %593 = vmatprep.subr.bf16.mxu0 0
        %594 = vmatpush1.bf16.xpose.msra.mxu0 %v581
        %595 = vmatprep.subr.bf16.mxu0 0
        %596 = vmatpush1.bf16.xpose.msra.mxu0 %v582
        %597 = vmatprep.subr.bf16.mxu0 0
        %598 = vmatpush1.bf16.xpose.msra.mxu0 %v583
        %599 = vmatprep.subr.bf16.mxu0 0
        %600 = vmatpush1.bf16.xpose.msra.mxu0 %v584
        %601 = vmatprep.subr.bf16.mxu0 0
        %602 = vmatpush1.bf16.xpose.msra.mxu0 %v585
        %603 = vmatprep.subr.bf16.mxu0 0
        %604 = vmatpush1.bf16.xpose.msra.mxu0 %v586
        %605 = vmatprep.subr.bf16.mxu0 0
        %606 = vmatpush1.bf16.xpose.msra.mxu0 %v587
        %607 = vmatprep.subr.bf16.mxu0 0
        %608 = vmatpush1.bf16.xpose.msra.mxu0 %v588
        %609 = vmatprep.subr.bf16.mxu0 0
        %610 = vmatpush1.bf16.xpose.msra.mxu0 0
        %611 = vmatprep.subr.bf16.mxu0 0
        %612 = vmatpush1.bf16.xpose.msra.mxu0 0
        %613 = vmatprep.subr.bf16.mxu0 0
        %614 = vmatpush1.bf16.xpose.msra.mxu0 0
        %615 = vmatprep.subr.bf16.mxu0 0
        %616 = vmatpush1.bf16.xpose.msra.mxu0 0
        %617 = vmatprep.subr.bf16.mxu0 0
        %618 = vmatpush1.bf16.xpose.msra.mxu0 0
        %619 = vmatprep.subr.bf16.mxu0 0
        %620 = vmatpush1.bf16.xpose.msra.mxu0 0
        %621 = vmatprep.subr.bf16.mxu0 0
        %622 = vmatpush1.bf16.xpose.msra.mxu0 0
        %623 = vmatprep.subr.bf16.mxu0 0
        %624 = vmatpush1.bf16.xpose.msra.mxu0 0
        %625 = vmatprep.mubr.bf16.mxu0 0
        %626 = vmatmul.mubr.bf16.gmra.mrb[0].mxu0 %v589
        %v627 = vpop.f32.mrb[0].mxu0
        %v628 = vadd.f32 0.0, %v627
        %v629 = vpop.f32.mrb[0].mxu0
        %v630 = vpop.f32.mrb[0].mxu0
        %v631 = vadd.f32 0.0, %v630
        %v632 = vpop.f32.mrb[0].mxu0
        %633 = vmatprep.mubr.bf16.mxu0 0
        %634 = vmatmul.mubr.bf16.gmra.mrb[0].mxu0 %v590
        %v635 = vpop.f32.mrb[0].mxu0
        %v636 = vadd.f32 0.0, %v635
        %v637 = vpop.f32.mrb[0].mxu0
        %v638 = vpop.f32.mrb[0].mxu0
        %v639 = vadd.f32 0.0, %v638
        %v640 = vpop.f32.mrb[0].mxu0
        %641 = vmatprep.mubr.bf16.mxu0 0
        %642 = vmatmul.mubr.bf16.gmra.mrb[0].mxu0 %v591
        %v643 = vpop.f32.mrb[0].mxu0
        %v644 = vadd.f32 0.0, %v643
        %v645 = vpop.f32.mrb[0].mxu0
        %v646 = vpop.f32.mrb[0].mxu0
        %v647 = vadd.f32 0.0, %v646
        %v648 = vpop.f32.mrb[0].mxu0
        %649 = vmatprep.mubr.bf16.mxu0 0
        %650 = vmatmul.mubr.bf16.gmra.mrb[0].mxu0 %v592
        %v651 = vpop.f32.mrb[0].mxu0
        %v652 = vadd.f32 0.0, %v651
        %v653 = vpop.f32.mrb[0].mxu0
        %v654 = vpop.f32.mrb[0].mxu0
        %v655 = vadd.f32 0.0, %v654
        %v656 = vpop.f32.mrb[0].mxu0
        %657 = vdwg.mxu0
        %s658 = smul.u32 %s31, 64
        %v659 = vlaneseq
        %v660 = vshrl.u32 %v659, 7
        %v661 = vadd.s32 %v660, 8
        %v662 = vadd.s32 %v660, 16
        %v663 = vadd.s32 %v660, 24
        %v664 = vadd.s32 %v660, 32
        %v665 = vadd.s32 %v660, 40
        %v666 = vadd.s32 %v660, 48
        %v667 = vadd.s32 %v660, 56
        %v668 = vstv %s658
        %v669 = vadd.s32 %v668, %v660
        %v670 = vadd.s32 %v668, %v661
        %v671 = vadd.s32 %v668, %v662
        %v672 = vadd.s32 %v668, %v663
        %v673 = vadd.s32 %v668, %v664
        %v674 = vadd.s32 %v668, %v665
        %v675 = vadd.s32 %v668, %v666
        %v676 = vadd.s32 %v668, %v667
        %s677 = smul.u32 %s32, 128
        %v678 = vlaneseq
        %v679 = vand.u32 %v678, 127
        %v680 = vstv %s677
        %v681 = vadd.s32 %v680, %v679
        %vm682 = vcmp.lt.s32.totalorder %v681, 256
        %vm683 = vcmp.ne.s32.totalorder %v669, %v681
        %vm684 = vcmp.ne.s32.totalorder %v670, %v681
        %vm685 = vcmp.ne.s32.totalorder %v671, %v681
        %vm686 = vcmp.ne.s32.totalorder %v672, %v681
        %vm687 = vcmp.ne.s32.totalorder %v673, %v681
        %vm688 = vcmp.ne.s32.totalorder %v674, %v681
        %vm689 = vcmp.ne.s32.totalorder %v675, %v681
        %vm690 = vcmp.ne.s32.totalorder %v676, %v681
        %vm691 = vmand %vm682, %vm683
        %vm692 = vmand %vm682, %vm684
        %vm693 = vmand %vm682, %vm685
        %vm694 = vmand %vm682, %vm686
        %vm695 = vmand %vm682, %vm687
        %vm696 = vmand %vm682, %vm688
        %vm697 = vmand %vm682, %vm689
        %vm698 = vmand %vm682, %vm690
        %v699 = vld [vmem:[%s292] sm:$0xff]
        %v700 = vld [vmem:[%s292 + $0x8] sm:$0xff]
        %v701 = vld [vmem:[%s292 + $0x10] sm:$0xff]
        %v702 = vld [vmem:[%s292 + $0x18] sm:$0xff]
        %v703 = vld [vmem:[%s292 + $0x20] sm:$0xff]
        %v704 = vld [vmem:[%s292 + $0x28] sm:$0xff]
        %v705 = vld [vmem:[%s292 + $0x30] sm:$0xff]
        %v706 = vld [vmem:[%s292 + $0x38] sm:$0xff]
        %v707 = vld [vmem:[%s300] sm:$0x1]
        %708 = vset.pattern.permute.xlu0 0
        %709 = vperm.xlu0 %708, %v699
        %v710 = vpop.permute.xlu0 %709
        %711 = vset.pattern.permute.xlu0 0
        %712 = vperm.xlu0 %711, %v700
        %v713 = vpop.permute.xlu0 %712
        %714 = vset.pattern.permute.xlu0 0
        %715 = vperm.xlu0 %714, %v701
        %v716 = vpop.permute.xlu0 %715
        %717 = vset.pattern.permute.xlu0 0
        %718 = vperm.xlu0 %717, %v702
        %v719 = vpop.permute.xlu0 %718
        %720 = vset.pattern.permute.xlu0 0
        %721 = vperm.xlu0 %720, %v703
        %v722 = vpop.permute.xlu0 %721
        %723 = vset.pattern.permute.xlu0 0
        %724 = vperm.xlu0 %723, %v704
        %v725 = vpop.permute.xlu0 %724
        %726 = vset.pattern.permute.xlu0 0
        %727 = vperm.xlu0 %726, %v705
        %v728 = vpop.permute.xlu0 %727
        %729 = vset.pattern.permute.xlu0 0
        %730 = vperm.xlu0 %729, %v706
        %v731 = vpop.permute.xlu0 %730
        %v732 = vlaneseq
        %v733 = vshrl.u32 %v732, 7
        %v734 = vsub.s32 0, %v733
        %v735 = vrot.slane %v707, %v734
        %vm736 = vcmp.eq.s32.totalorder %v710, %v735
        %vm737 = vcmp.eq.s32.totalorder %v713, %v735
        %vm738 = vcmp.eq.s32.totalorder %v716, %v735
        %vm739 = vcmp.eq.s32.totalorder %v719, %v735
        %vm740 = vcmp.eq.s32.totalorder %v722, %v735
        %vm741 = vcmp.eq.s32.totalorder %v725, %v735
        %vm742 = vcmp.eq.s32.totalorder %v728, %v735
        %vm743 = vcmp.eq.s32.totalorder %v731, %v735
        %vm744 = vmand %vm691, %vm736
        %vm745 = vmand %vm692, %vm737
        %vm746 = vmand %vm693, %vm738
        %vm747 = vmand %vm694, %vm739
        %vm748 = vmand %vm695, %vm740
        %vm749 = vmand %vm696, %vm741
        %vm750 = vmand %vm697, %vm742
        %vm751 = vmand %vm698, %vm743
        %v752 = vsel %vm682, %v628, -1e+30
        %v753 = vsel %vm682, %v631, -1e+30
        %v754 = vsel %vm682, %v636, -1e+30
        %v755 = vsel %vm682, %v639, -1e+30
        %v756 = vsel %vm682, %v644, -1e+30
        %v757 = vsel %vm682, %v647, -1e+30
        %v758 = vsel %vm682, %v652, -1e+30
        %v759 = vsel %vm682, %v655, -1e+30
        %760 = vmax.xlane.f32.xlu0 %v752
        %v761 = vpop.xlane.xlu0 %760
        %762 = vmax.xlane.f32.xlu0 %v753
        %v763 = vpop.xlane.xlu0 %762
        %764 = vmax.xlane.f32.xlu0 %v754
        %v765 = vpop.xlane.xlu0 %764
        %766 = vmax.xlane.f32.xlu0 %v755
        %v767 = vpop.xlane.xlu0 %766
        %768 = vmax.xlane.f32.xlu0 %v756
        %v769 = vpop.xlane.xlu0 %768
        %770 = vmax.xlane.f32.xlu0 %v757
        %v771 = vpop.xlane.xlu0 %770
        %772 = vmax.xlane.f32.xlu0 %v758
        %v773 = vpop.xlane.xlu0 %772
        %774 = vmax.xlane.f32.xlu0 %v759
        %v775 = vpop.xlane.xlu0 %774
        %v776 = vld [vmem:[#allocation3] sm:$0xff]
        %v777 = vld [vmem:[#allocation3 + $0x8] sm:$0xff]
        %v778 = vld [vmem:[#allocation3 + $0x10] sm:$0xff]
        %v779 = vld [vmem:[#allocation3 + $0x18] sm:$0xff]
        %v780 = vld [vmem:[#allocation3 + $0x20] sm:$0xff]
        %v781 = vld [vmem:[#allocation3 + $0x28] sm:$0xff]
        %v782 = vld [vmem:[#allocation3 + $0x30] sm:$0xff]
        %v783 = vld [vmem:[#allocation3 + $0x38] sm:$0xff]
        %v784 = vmax.f32 %v776, %v761
        %v785 = vmax.f32 %v777, %v763
        %v786 = vmax.f32 %v778, %v765
        %v787 = vmax.f32 %v779, %v767
        %v788 = vmax.f32 %v780, %v769
        %v789 = vmax.f32 %v781, %v771
        %v790 = vmax.f32 %v782, %v773
        %v791 = vmax.f32 %v783, %v775
        %v792 = vsub.f32 %v776, %v784
        %v793 = vsub.f32 %v777, %v785
        %v794 = vsub.f32 %v778, %v786
        %v795 = vsub.f32 %v779, %v787
        %v796 = vsub.f32 %v780, %v788
        %v797 = vsub.f32 %v781, %v789
        %v798 = vsub.f32 %v782, %v790
        %v799 = vsub.f32 %v783, %v791
        %v800 = vmul.f32 %v792, 1.442695
        %v801 = vpow.pop %v800
        %v802 = vmul.f32 %v793, 1.442695
        %v803 = vpow.pop %v802
        %v804 = vmul.f32 %v794, 1.442695
        %v805 = vpow.pop %v804
        %v806 = vmul.f32 %v795, 1.442695
        %v807 = vpow.pop %v806
        %v808 = vmul.f32 %v796, 1.442695
        %v809 = vpow.pop %v808
        %v810 = vmul.f32 %v797, 1.442695
        %v811 = vpow.pop %v810
        %v812 = vmul.f32 %v798, 1.442695
        %v813 = vpow.pop %v812
        %v814 = vmul.f32 %v799, 1.442695
        %v815 = vpow.pop %v814
        %817 = vset.pattern.permute.xlu0 0
        %818 = vperm.xlu0 %817, %v784
        %v819 = vpop.permute.xlu0 %818
        %822 = vset.pattern.permute.xlu0 0
        %823 = vperm.xlu0 %822, %v785
        %v824 = vpop.permute.xlu0 %823
        %827 = vset.pattern.permute.xlu0 0
        %828 = vperm.xlu0 %827, %v786
        %v829 = vpop.permute.xlu0 %828
        %832 = vset.pattern.permute.xlu0 0
        %833 = vperm.xlu0 %832, %v787
        %v834 = vpop.permute.xlu0 %833
        %837 = vset.pattern.permute.xlu0 0
        %838 = vperm.xlu0 %837, %v788
        %v839 = vpop.permute.xlu0 %838
        %842 = vset.pattern.permute.xlu0 0
        %843 = vperm.xlu0 %842, %v789
        %v844 = vpop.permute.xlu0 %843
        %847 = vset.pattern.permute.xlu0 0
        %848 = vperm.xlu0 %847, %v790
        %v849 = vpop.permute.xlu0 %848
        %852 = vset.pattern.permute.xlu0 0
        %853 = vperm.xlu0 %852, %v791
        %v854 = vpop.permute.xlu0 %853
        %v856 = vsub.f32 %v628, %v819
        %v857 = vsub.f32 %v631, %v824
        %v858 = vsub.f32 %v636, %v829
        %v859 = vsub.f32 %v639, %v834
        %v860 = vsub.f32 %v644, %v839
        %v861 = vsub.f32 %v647, %v844
        %v862 = vsub.f32 %v652, %v849
        %v863 = vsub.f32 %v655, %v854
        %v864 = vmul.f32 %v856, 1.442695
        %v865 = vpow.pop %v864
        %v866 = vmul.f32 %v857, 1.442695
        %v867 = vpow.pop %v866
        %v868 = vmul.f32 %v858, 1.442695
        %v869 = vpow.pop %v868
        %v870 = vmul.f32 %v859, 1.442695
        %v871 = vpow.pop %v870
        %v872 = vmul.f32 %v860, 1.442695
        %v873 = vpow.pop %v872
        %v874 = vmul.f32 %v861, 1.442695
        %v875 = vpow.pop %v874
        %v876 = vmul.f32 %v862, 1.442695
        %v877 = vpow.pop %v876
        %v878 = vmul.f32 %v863, 1.442695
        %v879 = vpow.pop %v878
        %v880 = vsel %vm691, %v865, 0.0
        %v881 = vsel %vm692, %v867, 0.0
        %v882 = vsel %vm693, %v869, 0.0
        %v883 = vsel %vm694, %v871, 0.0
        %v884 = vsel %vm695, %v873, 0.0
        %v885 = vsel %vm696, %v875, 0.0
        %v886 = vsel %vm697, %v877, 0.0
        %v887 = vsel %vm698, %v879, 0.0
        %v888 = vld [vmem:[#allocation4] sm:$0xff]
        %v889 = vld [vmem:[#allocation4 + $0x8] sm:$0xff]
        %v890 = vld [vmem:[#allocation4 + $0x10] sm:$0xff]
        %v891 = vld [vmem:[#allocation4 + $0x18] sm:$0xff]
        %v892 = vld [vmem:[#allocation4 + $0x20] sm:$0xff]
        %v893 = vld [vmem:[#allocation4 + $0x28] sm:$0xff]
        %v894 = vld [vmem:[#allocation4 + $0x30] sm:$0xff]
        %v895 = vld [vmem:[#allocation4 + $0x38] sm:$0xff]
        %v896 = vmul.f32 %v801, %v888
        %v897 = vmul.f32 %v803, %v889
        %v898 = vmul.f32 %v805, %v890
        %v899 = vmul.f32 %v807, %v891
        %v900 = vmul.f32 %v809, %v892
        %v901 = vmul.f32 %v811, %v893
        %v902 = vmul.f32 %v813, %v894
        %v903 = vmul.f32 %v815, %v895
        %904 = vadd.xlane.f32.xlu0 %v880
        %v905 = vpop.xlane.xlu0 %904
        %906 = vadd.xlane.f32.xlu0 %v881
        %v907 = vpop.xlane.xlu0 %906
        %908 = vadd.xlane.f32.xlu0 %v882
        %v909 = vpop.xlane.xlu0 %908
        %910 = vadd.xlane.f32.xlu0 %v883
        %v911 = vpop.xlane.xlu0 %910
        %912 = vadd.xlane.f32.xlu0 %v884
        %v913 = vpop.xlane.xlu0 %912
        %914 = vadd.xlane.f32.xlu0 %v885
        %v915 = vpop.xlane.xlu0 %914
        %916 = vadd.xlane.f32.xlu0 %v886
        %v917 = vpop.xlane.xlu0 %916
        %918 = vadd.xlane.f32.xlu0 %v887
        %v919 = vpop.xlane.xlu0 %918
        %v920 = vadd.f32 %v896, %v905
        %v921 = vadd.f32 %v897, %v907
        %v922 = vadd.f32 %v898, %v909
        %v923 = vadd.f32 %v899, %v911
        %v924 = vadd.f32 %v900, %v913
        %v925 = vadd.f32 %v901, %v915
        %v926 = vadd.f32 %v902, %v917
        %v927 = vadd.f32 %v903, %v919
        %vm928 = vcmask 7168
        %929 = vst.msk [vmem:[#allocation4] sm:$0xff] %vm928, %v920
        %930 = vst.msk [vmem:[#allocation4 + $0x8] sm:$0xff] %vm928, %v921
        %931 = vst.msk [vmem:[#allocation4 + $0x10] sm:$0xff] %vm928, %v922
        %932 = vst.msk [vmem:[#allocation4 + $0x18] sm:$0xff] %vm928, %v923
        %933 = vst.msk [vmem:[#allocation4 + $0x20] sm:$0xff] %vm928, %v924
        %934 = vst.msk [vmem:[#allocation4 + $0x28] sm:$0xff] %vm928, %v925
        %935 = vst.msk [vmem:[#allocation4 + $0x30] sm:$0xff] %vm928, %v926
        %936 = vst.msk [vmem:[#allocation4 + $0x38] sm:$0xff] %vm928, %v927
        %v937 = vld [vmem:[#allocation5] sm:$0xff]
        %v938 = vld [vmem:[#allocation5 + $0x8] sm:$0xff]
        %v939 = vld [vmem:[#allocation5 + $0x10] sm:$0xff]
        %v940 = vld [vmem:[#allocation5 + $0x18] sm:$0xff]
        %v941 = vld [vmem:[#allocation5 + $0x20] sm:$0xff]
        %v942 = vld [vmem:[#allocation5 + $0x28] sm:$0xff]
        %v943 = vld [vmem:[#allocation5 + $0x30] sm:$0xff]
        %v944 = vld [vmem:[#allocation5 + $0x38] sm:$0xff]
        %v945 = vsel %vm744, %v628, 0.0
        %v946 = vsel %vm745, %v631, 0.0
        %v947 = vsel %vm746, %v636, 0.0
        %v948 = vsel %vm747, %v639, 0.0
        %v949 = vsel %vm748, %v644, 0.0
        %v950 = vsel %vm749, %v647, 0.0
        %v951 = vsel %vm750, %v652, 0.0
        %v952 = vsel %vm751, %v655, 0.0
        %953 = vadd.xlane.f32.xlu0 %v945
        %v954 = vpop.xlane.xlu0 %953
        %955 = vadd.xlane.f32.xlu0 %v946
        %v956 = vpop.xlane.xlu0 %955
        %957 = vadd.xlane.f32.xlu0 %v947
        %v958 = vpop.xlane.xlu0 %957
        %959 = vadd.xlane.f32.xlu0 %v948
        %v960 = vpop.xlane.xlu0 %959
        %961 = vadd.xlane.f32.xlu0 %v949
        %v962 = vpop.xlane.xlu0 %961
        %963 = vadd.xlane.f32.xlu0 %v950
        %v964 = vpop.xlane.xlu0 %963
        %965 = vadd.xlane.f32.xlu0 %v951
        %v966 = vpop.xlane.xlu0 %965
        %967 = vadd.xlane.f32.xlu0 %v952
        %v968 = vpop.xlane.xlu0 %967
        %v969 = vadd.f32 %v937, %v954
        %v970 = vadd.f32 %v938, %v956
        %v971 = vadd.f32 %v939, %v958
        %v972 = vadd.f32 %v940, %v960
        %v973 = vadd.f32 %v941, %v962
        %v974 = vadd.f32 %v942, %v964
        %v975 = vadd.f32 %v943, %v966
        %v976 = vadd.f32 %v944, %v968
        %977 = vst.msk [vmem:[#allocation5] sm:$0xff] %vm928, %v969
        %978 = vst.msk [vmem:[#allocation5 + $0x8] sm:$0xff] %vm928, %v970
        %979 = vst.msk [vmem:[#allocation5 + $0x10] sm:$0xff] %vm928, %v971
        %980 = vst.msk [vmem:[#allocation5 + $0x18] sm:$0xff] %vm928, %v972
        %981 = vst.msk [vmem:[#allocation5 + $0x20] sm:$0xff] %vm928, %v973
        %982 = vst.msk [vmem:[#allocation5 + $0x28] sm:$0xff] %vm928, %v974
        %983 = vst.msk [vmem:[#allocation5 + $0x30] sm:$0xff] %vm928, %v975
        %984 = vst.msk [vmem:[#allocation5 + $0x38] sm:$0xff] %vm928, %v976
        %v985 = vld [vmem:[#allocation6] sm:$0xff]
        %v986 = vld [vmem:[#allocation6 + $0x8] sm:$0xff]
        %v987 = vld [vmem:[#allocation6 + $0x10] sm:$0xff]
        %v988 = vld [vmem:[#allocation6 + $0x18] sm:$0xff]
        %v989 = vld [vmem:[#allocation6 + $0x20] sm:$0xff]
        %v990 = vld [vmem:[#allocation6 + $0x28] sm:$0xff]
        %v991 = vld [vmem:[#allocation6 + $0x30] sm:$0xff]
        %v992 = vld [vmem:[#allocation6 + $0x38] sm:$0xff]
        %v993 = vsel %vm744, 1, 0
        %v994 = vsel %vm745, 1, 0
        %v995 = vsel %vm746, 1, 0
        %v996 = vsel %vm747, 1, 0
        %v997 = vsel %vm748, 1, 0
        %v998 = vsel %vm749, 1, 0
        %v999 = vsel %vm750, 1, 0
        %v1000 = vsel %vm751, 1, 0
        %v1001 = vcvt.s32.f32 %v993
        %v1002 = vcvt.s32.f32 %v994
        %v1003 = vcvt.s32.f32 %v995
        %v1004 = vcvt.s32.f32 %v996
        %v1005 = vcvt.s32.f32 %v997
        %v1006 = vcvt.s32.f32 %v998
        %v1007 = vcvt.s32.f32 %v999
        %v1008 = vcvt.s32.f32 %v1000
        %1009 = vadd.xlane.f32.xlu0 %v1001
        %v1010 = vpop.xlane.xlu0 %1009
        %1011 = vadd.xlane.f32.xlu0 %v1002
        %v1012 = vpop.xlane.xlu0 %1011
        %1013 = vadd.xlane.f32.xlu0 %v1003
        %v1014 = vpop.xlane.xlu0 %1013
        %1015 = vadd.xlane.f32.xlu0 %v1004
        %v1016 = vpop.xlane.xlu0 %1015
        %1017 = vadd.xlane.f32.xlu0 %v1005
        %v1018 = vpop.xlane.xlu0 %1017
        %1019 = vadd.xlane.f32.xlu0 %v1006
        %v1020 = vpop.xlane.xlu0 %1019
        %1021 = vadd.xlane.f32.xlu0 %v1007
        %v1022 = vpop.xlane.xlu0 %1021
        %1023 = vadd.xlane.f32.xlu0 %v1008
        %v1024 = vpop.xlane.xlu0 %1023
        %v1025 = vadd.f32 %v985, %v1010
        %v1026 = vadd.f32 %v986, %v1012
        %v1027 = vadd.f32 %v987, %v1014
        %v1028 = vadd.f32 %v988, %v1016
        %v1029 = vadd.f32 %v989, %v1018
        %v1030 = vadd.f32 %v990, %v1020
        %v1031 = vadd.f32 %v991, %v1022
        %v1032 = vadd.f32 %v992, %v1024
        %1033 = vst.msk [vmem:[#allocation6] sm:$0xff] %vm928, %v1025
        %1034 = vst.msk [vmem:[#allocation6 + $0x8] sm:$0xff] %vm928, %v1026
        %1035 = vst.msk [vmem:[#allocation6 + $0x10] sm:$0xff] %vm928, %v1027
        %1036 = vst.msk [vmem:[#allocation6 + $0x18] sm:$0xff] %vm928, %v1028
        %1037 = vst.msk [vmem:[#allocation6 + $0x20] sm:$0xff] %vm928, %v1029
        %1038 = vst.msk [vmem:[#allocation6 + $0x28] sm:$0xff] %vm928, %v1030
        %1039 = vst.msk [vmem:[#allocation6 + $0x30] sm:$0xff] %vm928, %v1031
        %1040 = vst.msk [vmem:[#allocation6 + $0x38] sm:$0xff] %vm928, %v1032
        %1041 = vst.msk [vmem:[#allocation3] sm:$0xff] %vm928, %v784
        %1042 = vst.msk [vmem:[#allocation3 + $0x8] sm:$0xff] %vm928, %v785
        %1043 = vst.msk [vmem:[#allocation3 + $0x10] sm:$0xff] %vm928, %v786
        %1044 = vst.msk [vmem:[#allocation3 + $0x18] sm:$0xff] %vm928, %v787
        %1045 = vst.msk [vmem:[#allocation3 + $0x20] sm:$0xff] %vm928, %v788
        %1046 = vst.msk [vmem:[#allocation3 + $0x28] sm:$0xff] %vm928, %v789
        %1047 = vst.msk [vmem:[#allocation3 + $0x30] sm:$0xff] %vm928, %v790
        %1048 = vst.msk [vmem:[#allocation3 + $0x38] sm:$0xff] %vm928, %v791
        %p1049 = scmp.eq.s32.totalorder %s32, 1
        // Predicated region
        $region57: #{tpu_custom_call.1} parent=35 // pred_check
          %p1050 = pneg %p1049
        $region58: #{tpu_custom_call.1} parent=35 // pred_check_branch
          %1052 = sbr.rel (%p1050) target = $region60
        $region59: #{tpu_custom_call.1} parent=35 // pred_region
          %v1053 = vld [vmem:[#allocation6] sm:$0xff]
          %v1054 = vld [vmem:[#allocation6 + $0x8] sm:$0xff]
          %v1055 = vld [vmem:[#allocation6 + $0x10] sm:$0xff]
          %v1056 = vld [vmem:[#allocation6 + $0x18] sm:$0xff]
          %v1057 = vld [vmem:[#allocation6 + $0x20] sm:$0xff]
          %v1058 = vld [vmem:[#allocation6 + $0x28] sm:$0xff]
          %v1059 = vld [vmem:[#allocation6 + $0x30] sm:$0xff]
          %v1060 = vld [vmem:[#allocation6 + $0x38] sm:$0xff]
          %vm1061 = vcmp.lt.f32.partialorder %v1053, 1e-06
          %vm1062 = vcmp.lt.f32.partialorder %v1054, 1e-06
          %vm1063 = vcmp.lt.f32.partialorder %v1055, 1e-06
          %vm1064 = vcmp.lt.f32.partialorder %v1056, 1e-06
          %vm1065 = vcmp.lt.f32.partialorder %v1057, 1e-06
          %vm1066 = vcmp.lt.f32.partialorder %v1058, 1e-06
          %vm1067 = vcmp.lt.f32.partialorder %v1059, 1e-06
          %vm1068 = vcmp.lt.f32.partialorder %v1060, 1e-06
          %v1069 = vsel %vm1061, 1.0, %v1053
          %v1070 = vsel %vm1062, 1.0, %v1054
          %v1071 = vsel %vm1063, 1.0, %v1055
          %v1072 = vsel %vm1064, 1.0, %v1056
          %v1073 = vsel %vm1065, 1.0, %v1057
          %v1074 = vsel %vm1066, 1.0, %v1058
          %v1075 = vsel %vm1067, 1.0, %v1059
          %v1076 = vsel %vm1068, 1.0, %v1060
          %v1077 = vld [vmem:[#allocation3] sm:$0xff]
          %v1078 = vld [vmem:[#allocation3 + $0x8] sm:$0xff]
          %v1079 = vld [vmem:[#allocation3 + $0x10] sm:$0xff]
          %v1080 = vld [vmem:[#allocation3 + $0x18] sm:$0xff]
          %v1081 = vld [vmem:[#allocation3 + $0x20] sm:$0xff]
          %v1082 = vld [vmem:[#allocation3 + $0x28] sm:$0xff]
          %v1083 = vld [vmem:[#allocation3 + $0x30] sm:$0xff]
          %v1084 = vld [vmem:[#allocation3 + $0x38] sm:$0xff]
          %v1085 = vld [vmem:[#allocation4] sm:$0xff]
          %v1086 = vld [vmem:[#allocation4 + $0x8] sm:$0xff]
          %v1087 = vld [vmem:[#allocation4 + $0x10] sm:$0xff]
          %v1088 = vld [vmem:[#allocation4 + $0x18] sm:$0xff]
          %v1089 = vld [vmem:[#allocation4 + $0x20] sm:$0xff]
          %v1090 = vld [vmem:[#allocation4 + $0x28] sm:$0xff]
          %v1091 = vld [vmem:[#allocation4 + $0x30] sm:$0xff]
          %v1092 = vld [vmem:[#allocation4 + $0x38] sm:$0xff]
          %v1093 = vlog2.pop %v1085
          %v1094 = vmul.f32 %v1093, 0.6931472
          %v1095 = vlog2.pop %v1086
          %v1096 = vmul.f32 %v1095, 0.6931472
          %v1097 = vlog2.pop %v1087
          %v1098 = vmul.f32 %v1097, 0.6931472
          %v1099 = vlog2.pop %v1088
          %v1100 = vmul.f32 %v1099, 0.6931472
          %v1101 = vlog2.pop %v1089
          %v1102 = vmul.f32 %v1101, 0.6931472
          %v1103 = vlog2.pop %v1090
          %v1104 = vmul.f32 %v1103, 0.6931472
          %v1105 = vlog2.pop %v1091
          %v1106 = vmul.f32 %v1105, 0.6931472
          %v1107 = vlog2.pop %v1092
          %v1108 = vmul.f32 %v1107, 0.6931472
          %v1109 = vadd.f32 %v1077, %v1094
          %v1110 = vadd.f32 %v1078, %v1096
          %v1111 = vadd.f32 %v1079, %v1098
          %v1112 = vadd.f32 %v1080, %v1100
          %v1113 = vadd.f32 %v1081, %v1102
          %v1114 = vadd.f32 %v1082, %v1104
          %v1115 = vadd.f32 %v1083, %v1106
          %v1116 = vadd.f32 %v1084, %v1108
          %v1117 = vld [vmem:[#allocation5] sm:$0xff]
          %v1118 = vld [vmem:[#allocation5 + $0x8] sm:$0xff]
          %v1119 = vld [vmem:[#allocation5 + $0x10] sm:$0xff]
          %v1120 = vld [vmem:[#allocation5 + $0x18] sm:$0xff]
          %v1121 = vld [vmem:[#allocation5 + $0x20] sm:$0xff]
          %v1122 = vld [vmem:[#allocation5 + $0x28] sm:$0xff]
          %v1123 = vld [vmem:[#allocation5 + $0x30] sm:$0xff]
          %v1124 = vld [vmem:[#allocation5 + $0x38] sm:$0xff]
          %v1125 = vmul.f32 %v1053, %v1109
          %v1126 = vmul.f32 %v1054, %v1110
          %v1127 = vmul.f32 %v1055, %v1111
          %v1128 = vmul.f32 %v1056, %v1112
          %v1129 = vmul.f32 %v1057, %v1113
          %v1130 = vmul.f32 %v1058, %v1114
          %v1131 = vmul.f32 %v1059, %v1115
          %v1132 = vmul.f32 %v1060, %v1116
          %v1133 = vsub.f32 %v1117, %v1125
          %v1134 = vsub.f32 %v1118, %v1126
          %v1135 = vsub.f32 %v1119, %v1127
          %v1136 = vsub.f32 %v1120, %v1128
          %v1137 = vsub.f32 %v1121, %v1129
          %v1138 = vsub.f32 %v1122, %v1130
          %v1139 = vsub.f32 %v1123, %v1131
          %v1140 = vsub.f32 %v1124, %v1132
          %v1141 = vrcp.pop %v1069
          %v1142 = vmul.f32 %v1133, %v1141
          %v1143 = vrcp.pop %v1070
          %v1144 = vmul.f32 %v1134, %v1143
          %v1145 = vrcp.pop %v1071
          %v1146 = vmul.f32 %v1135, %v1145
          %v1147 = vrcp.pop %v1072
          %v1148 = vmul.f32 %v1136, %v1147
          %v1149 = vrcp.pop %v1073
          %v1150 = vmul.f32 %v1137, %v1149
          %v1151 = vrcp.pop %v1074
          %v1152 = vmul.f32 %v1138, %v1151
          %v1153 = vrcp.pop %v1075
          %v1154 = vmul.f32 %v1139, %v1153
          %v1155 = vrcp.pop %v1076
          %v1156 = vmul.f32 %v1140, %v1155
          %v1157 = vmul.f32 %v1142, -1.0
          %v1158 = vmul.f32 %v1144, -1.0
          %v1159 = vmul.f32 %v1146, -1.0
          %v1160 = vmul.f32 %v1148, -1.0
          %v1161 = vmul.f32 %v1150, -1.0
          %v1162 = vmul.f32 %v1152, -1.0
          %v1163 = vmul.f32 %v1154, -1.0
          %v1164 = vmul.f32 %v1156, -1.0
          %1165 = vst.msk [vmem:[%s338] sm:$0xff] %vm928, %v1157
          %1166 = vst.msk [vmem:[%s338 + $0x8] sm:$0xff] %vm928, %v1158
          %1167 = vst.msk [vmem:[%s338 + $0x10] sm:$0xff] %vm928, %v1159
          %1168 = vst.msk [vmem:[%s338 + $0x18] sm:$0xff] %vm928, %v1160
          %1169 = vst.msk [vmem:[%s338 + $0x20] sm:$0xff] %vm928, %v1161
          %1170 = vst.msk [vmem:[%s338 + $0x28] sm:$0xff] %vm928, %v1162
          %1171 = vst.msk [vmem:[%s338 + $0x30] sm:$0xff] %vm928, %v1163
          %1172 = vst.msk [vmem:[%s338 + $0x38] sm:$0xff] %vm928, %v1164
        $region60: #{tpu_custom_call.1} parent=35 // pred_fallthru
          _
        %s1173 = sand.u32 %s151, 1
        %s1174 = scalar_lea.sflag [#allocation9], %s1173
        %s1175 = sand.u32 %s151, 1
        %s1176 = smul.addr %s1175, 64
        %s1177 = scalar_lea.vmem [#allocation15], %s1176
        // Predicated region
        $region61: #{tpu_custom_call.1} parent=35 // pred_check
          %p1178 = pneg %p161
        $region62: #{tpu_custom_call.1} parent=35 // pred_check_branch
          %1180 = sbr.rel (%p1178) target = $region64
        $region63: #{tpu_custom_call.1} parent=35 // pred_region
          %s1181 = smul.u32 8, %s31
          %s1183 = ssub.s32 1024, 1024
          %1184 = vsyncadd %s1174, %s1183
          %s1185 = smul.addr %s1181, 128
          %s1186 = scalar_lea.hbm %s4, %s1185
          %s1187 = sshll.u32 %s1177, 4
          %s1188 = int_to_ptr.vmem [resolvable:$true] %s1187
          %1193 = dma.vmem_to_hbm [thread:$0]  %s1188, 1024, %s1186, %s1174, 128, 128, 8
        $region64: #{tpu_custom_call.1} parent=35 // pred_fallthru
          _
      $region36: #{tpu_custom_call.1} parent=5 // pred_fallthru
        _
      %p1194 = scmp.le.s32.totalorder 2, %s22
      // Predicated region
      $region65: #{tpu_custom_call.1} parent=5 // pred_check
        %p1195 = pneg %p1194
      $region66: #{tpu_custom_call.1} parent=5 // pred_check_branch
        %1197 = sbr.rel (%p1195) target = $region68
      $region67: #{tpu_custom_call.1} parent=5 // pred_region
        %s1198 = ssub.s32 %s22, 2
        // Predicated region
        $region69: #{tpu_custom_call.1} parent=67 // pred_check
          %p1199 = pneg %p167
        $region70: #{tpu_custom_call.1} parent=67 // pred_check_branch
          %1201 = sbr.rel (%p1199) target = $region72
        $region71: #{tpu_custom_call.1} parent=67 // pred_region
          %s1202 = sand.u32 %s152, 1
          %s1203 = scalar_lea.sflag [#allocation9], %s1202
          %s1204 = sand.u32 %s152, 1
          %s1205 = smul.addr %s1204, 64
          %s1206 = scalar_lea.vmem [#allocation15], %s1205
          %1207 = dma.done %s1203, 1024
        $region72: #{tpu_custom_call.1} parent=67 // pred_fallthru
          _
      $region68: #{tpu_custom_call.1} parent=5 // pred_fallthru
        _
    $region6: #{tpu_custom_call.1} parent=1 // loop_footer
      %s26 = sadd.s32 1, %s22
    $region7: #{tpu_custom_call.1} parent=1 // loop_footer_branch
      %21 = sbr.rel target = $region3
    $region8: #{tpu_custom_call.1} parent=1 // loop_exit
      _
    %1208 = vsyncpa [#allocation8], 1
    %s1209 = scalar_lea.sflag [#allocation8], 1
    %1210 = vsyncpa %s1209, 1
    %1211 = vsyncpa [#allocation11], 1
    %s1212 = scalar_lea.sflag [#allocation11], 1
    %1213 = vsyncpa %s1212, 1
    %1214 = vsyncpa [#allocation14], 1
    %s1215 = scalar_lea.sflag [#allocation14], 1
    %1216 = vsyncpa %s1215, 1
    %1217 = vsyncpa [#allocation9], 1
    %s1218 = scalar_lea.sflag [#allocation9], 1
    %1219 = vsyncpa %s1218, 1

</llo_original>
